<compile_context>
chip_gen: v6e
topology: v6e:2x2x1
jax: 0.10.0
libtpu: 0.0.40
codegen_flags: <defaults>
</compile_context>

<pallas_src>
import jax
import jax.numpy as jnp
from jax.experimental import pallas as pl
from jax.experimental.pallas import tpu as pltpu

_LANES = 128


def _compute_terms(hm_ref, ps_ref, px_ref, py_ref, pw_ref, ph_ref,
                   dx0_ref, dx1_ref, dw0_ref, dw1_ref, m0_ref, m1_ref):
    """Elementwise CenterNet terms for one tile (works for 2-D or 3-D blocks).

    Returns un-reduced f32 arrays: (n_pos, focal, l1_xy, l1_wh).
    """
    f32 = jnp.float32
    hm = hm_ref[...].astype(f32)
    ps = ps_ref[...].astype(f32)

    pos_b = hm == 1.0
    one_m_hm = 1.0 - hm
    t2 = one_m_hm * one_m_hm
    neg_w = t2 * t2                                   # (1 - hm)**4, VALU only

    one_m_ps = 1.0 - ps
    pos_term = jnp.log(ps) * (one_m_ps * one_m_ps)
    neg_term = jnp.log(one_m_ps) * (ps * ps) * neg_w
    # Single nested select (pos/neg sums are only ever used added together).
    # The select also keeps a -inf/NaN on the *unselected* branch from
    # poisoning the sum; identical to the PyTorch formula whenever that
    # formula is itself finite.
    focal = jnp.where(pos_b, pos_term, jnp.where(hm < 1.0, neg_term, 0.0))
    n_pos = pos_b.astype(f32)

    # Mask tiles loaded once per step and reused by both xy and wh.
    m0 = m0_ref[...].astype(f32)
    m1 = m1_ref[...].astype(f32)
    # |p - d| * m == |p*m - d*m| for any mask >= 0; one fewer vmul / element.
    l1_xy = (jnp.abs(px_ref[...].astype(f32) - dx0_ref[...].astype(f32)) * m0
             + jnp.abs(py_ref[...].astype(f32) - dx1_ref[...].astype(f32)) * m1)
    l1_wh = (jnp.abs(pw_ref[...].astype(f32) - dw0_ref[...].astype(f32)) * m0
             + jnp.abs(ph_ref[...].astype(f32) - dw1_ref[...].astype(f32)) * m1)
    return n_pos, focal, l1_xy, l1_wh


def _fold_to_8x128(x):
    """(B, R, 128) f32 -> (8, 128): pure vreg adds, no cross-lane XLU work."""
    x = jnp.sum(x, axis=0)                       # (R, 128)
    return jnp.sum(x.reshape(-1, 8, _LANES), axis=0)


def _make_row_kernel(total_blocks, guard):
    """Hot path: (B, tile_rows, 128) blocks, (32, 128) per-core output.

    Output rows [0:8]=n_pos, [8:16]=focal, [16:24]=l1_xy, [24:32]=l1_wh
    (each an (8,128) partial-sum slab; the wrapper reduces it)."""
    def kernel(hm_ref, ps_ref, px_ref, py_ref, pw_ref, ph_ref,
               dx0_ref, dx1_ref, dw0_ref, dw1_ref, m0_ref, m1_ref, out_ref):
        step = pl.program_id(1)

        @pl.when(step == 0)
        def _init():
            out_ref[...] = jnp.zeros_like(out_ref)

        def _acc():
            n_pos, focal, l1_xy, l1_wh = _compute_terms(
                hm_ref, ps_ref, px_ref, py_ref, pw_ref, ph_ref,
                dx0_ref, dx1_ref, dw0_ref, dw1_ref, m0_ref, m1_ref)
            out_ref[0:8, :] += _fold_to_8x128(n_pos)
            out_ref[8:16, :] += _fold_to_8x128(focal)
            out_ref[16:24, :] += _fold_to_8x128(l1_xy)
            out_ref[24:32, :] += _fold_to_8x128(l1_wh)

        if guard:
            g = pl.program_id(0) * pl.num_programs(1) + step
            pl.when(g < total_blocks)(_acc)
        else:
            _acc()

    return kernel


def _make_lane_kernel(total_blocks, guard):
    """Fallback path (HW % 1024 != 0): (B, tile_hw) blocks, (8,128) output
    where rows 0..3 carry (n_pos, focal, l1_xy, l1_wh), replicated per lane."""
    def kernel(hm_ref, ps_ref, px_ref, py_ref, pw_ref, ph_ref,
               dx0_ref, dx1_ref, dw0_ref, dw1_ref, m0_ref, m1_ref, out_ref):
        step = pl.program_id(1)

        @pl.when(step == 0)
        def _init():
            out_ref[...] = jnp.zeros_like(out_ref)

        def _acc():
            n_pos, focal, l1_xy, l1_wh = _compute_terms(
                hm_ref, ps_ref, px_ref, py_ref, pw_ref, ph_ref,
                dx0_ref, dx1_ref, dw0_ref, dw1_ref, m0_ref, m1_ref)
            row = jnp.ones((1, _LANES), jnp.float32)
            upd = jnp.concatenate(
                [jnp.sum(n_pos) * row, jnp.sum(focal) * row,
                 jnp.sum(l1_xy) * row, jnp.sum(l1_wh) * row,
                 jnp.zeros((4, _LANES), jnp.float32)], axis=0)
            out_ref[...] += upd

        if guard:
            g = pl.program_id(0) * pl.num_programs(1) + step
            pl.when(g < total_blocks)(_acc)
        else:
            _acc()

    return kernel


def _vmem_capacity_bytes():
    try:
        return int(pltpu.get_tpu_info().vmem_capacity_bytes)
    except Exception:
        return 64 << 20      # conservative default (v7x per-TensorCore VMEM)


def _choose_tile(total, unit, footprint_fn, budget):
    """Largest multiple of `unit` dividing `total` whose double-buffered
    footprint fits `budget`, preferring >= 2 blocks (so v7x's two TensorCores
    both get work) and an even block count when possible."""
    cands = [t for t in range(unit, total + 1, unit) if total % t == 0]
    feasible = [t for t in cands if footprint_fn(t) <= budget] or [cands[0]]
    split2 = [t for t in feasible if total // t >= 2]
    even = [t for t in split2 if (total // t) % 2 == 0]
    if even:
        return max(even)
    if split2:
        return max(split2)
    return max(feasible)


def location_box_centernet_loss(gt_box, pred, *, tile_override=None):
    """JAX/Pallas equivalent of Location_Box_CenterNet.forward.

    gt_box: dict with 'hm' (B,1,H,W), 'dense_xy' (B,2,H,W),
            'dense_wh' (B,2,H,W), 'dense_mask' (B,2,H,W)
    pred:   (B,5,H,W)  -- channel 0: score, 1:3: xy, 3:5: wh
    Inputs may be f32 or bf16; they are streamed in their incoming dtype and
    upcast to f32 in-register.
    # TODO(synk): if hm comes in bf16, verify gaussian values < 1 do not round
    # to exactly 1.0 (the == 1.0 peak test would then mis-classify them).

    Returns (loss, loss_s, loss_xy, loss_wh) scalars.
    """
    hm = gt_box['hm']
    dense_xy = gt_box['dense_xy']
    dense_wh = gt_box['dense_wh']
    dense_mask = gt_box['dense_mask']

    B, C, H, W = pred.shape
    assert C == 5
    assert hm.shape == (B, 1, H, W)
    assert dense_xy.shape == (B, 2, H, W)
    assert dense_wh.shape == (B, 2, H, W)
    assert dense_mask.shape == (B, 2, H, W)
    HW = H * W
    # TODO(synk): support H*W not a multiple of 128 (needs a padded/masked
    # tail tile); CenterNet output maps (e.g. 128x128) satisfy this.
    assert HW % 128 == 0, "H*W must be a multiple of 128"
    rows = HW // 128

    def _isz(x):
        return jnp.dtype(x.dtype).itemsize

    elem_bytes = (_isz(hm) + 5 * _isz(pred) + 2 * _isz(dense_xy)
                  + 2 * _isz(dense_wh) + 2 * _isz(dense_mask))

    vmem_cap = _vmem_capacity_bytes()
    input_budget = int(vmem_cap * 0.45)      # for the double-buffered inputs

    use_rows = (rows % 8 == 0)
    if use_rows:
        # Hot path: dense (8,128) vreg tiles independent of batch size.
        footprint_fn = lambda t: 2 * B * t * 128 * elem_bytes
        tile = tile_override if tile_override is not None else \
            _choose_tile(rows, 8, footprint_fn, input_budget)
        assert tile % 8 == 0 and rows % tile == 0, (tile, rows)
        blocks = rows // tile
        block_rows = 32        # 4 quantities x 8 sublanes per core
    else:
        # Fallback (HW % 1024 != 0): lane-major (B, tile_hw) blocks.  The
        # sublane dim pads B up to 8, so this path is slower for B < 8.
        padded_b = ((B + 7) // 8) * 8
        footprint_fn = lambda t: 2 * padded_b * t * elem_bytes
        tile = tile_override if tile_override is not None else \
            _choose_tile(HW, 128, footprint_fn, input_budget)
        assert tile % 128 == 0 and HW % tile == 0, (tile, HW)
        blocks = HW // tile
        block_rows = 8         # 4 quantities on 4 sublanes (lane 0 read back)

    footprint = footprint_fn(tile)
    ncores = 2 if blocks >= 2 else 1
    steps = (blocks + ncores - 1) // ncores
    guard = (ncores * steps != blocks)       # odd block count -> clamped tail

    # Explicit scoped-VMEM limit (default is only 16 MiB on v5e / 32 MiB on
    # v6e, v7x), generation-aware, with headroom for the resident output block
    # and compiler-internal scratch.
    vmem_limit = footprint + (16 << 20)
    vmem_limit = min(max(vmem_limit, 32 << 20),
                     max(vmem_cap - (2 << 20), footprint + (2 << 20)))

    if use_rows:
        hm_v = hm.reshape(B, rows, 128)
        pred_v = pred.reshape(B, 5 * rows, 128)
        dxy_v = dense_xy.reshape(B, 2 * rows, 128)
        dwh_v = dense_wh.reshape(B, 2 * rows, 128)
        dm_v = dense_mask.reshape(B, 2 * rows, 128)

        def spec(ch):
            def idx(c, s, _ch=ch):
                g = jnp.minimum(c * steps + s, blocks - 1)
                return (0, _ch * blocks + g, 0)
            return pl.BlockSpec((B, tile, 128), idx)

        kernel = _make_row_kernel(blocks, guard)
    else:
        hm_v = hm.reshape(B, HW)
        pred_v = pred.reshape(B, 5 * HW)
        dxy_v = dense_xy.reshape(B, 2 * HW)
        dwh_v = dense_wh.reshape(B, 2 * HW)
        dm_v = dense_mask.reshape(B, 2 * HW)

        def spec(ch):
            def idx(c, s, _ch=ch):
                g = jnp.minimum(c * steps + s, blocks - 1)
                return (0, _ch * blocks + g)
            return pl.BlockSpec((B, tile), idx)

        kernel = _make_lane_kernel(blocks, guard)

    # Channel selection happens purely in the index_maps; pred / dense_* are
    # each streamed from HBM exactly once (no channel slice is materialized).
    in_specs = [spec(0),                                      # hm
                spec(0), spec(1), spec(2), spec(3), spec(4),  # pred channels
                spec(0), spec(1),                             # dense_xy
                spec(0), spec(1),                             # dense_wh
                spec(0), spec(1)]                             # dense_mask
    out_spec = pl.BlockSpec((block_rows, _LANES), lambda c, s: (c, 0))
    out_shape = jax.ShapeDtypeStruct((ncores * block_rows, _LANES), jnp.float32)

    cost = pl.CostEstimate(
        flops=int(30 * B * HW),
        transcendentals=int(2 * B * HW),
        bytes_accessed=int(B * HW * elem_bytes
                           + ncores * block_rows * _LANES * 4))

    partials = pl.pallas_call(
        kernel,
        out_shape=out_shape,
        grid=(ncores, steps),
        in_specs=in_specs,
        out_specs=out_spec,
        compiler_params=pltpu.CompilerParams(
            dimension_semantics=("parallel", "arbitrary"),
            vmem_limit_bytes=int(vmem_limit)),
        cost_estimate=cost,
    )(hm_v, pred_v, pred_v, pred_v, pred_v, pred_v,
      dxy_v, dxy_v, dwh_v, dwh_v, dm_v, dm_v)

    # Tiny cross-core combine + finalize in the wrapper (global num_pos is
    # only known after both cores' partials are merged).
    if use_rows:
        sums = partials.reshape(ncores, 4, 8, _LANES).sum(axis=(0, 2, 3))
    else:
        sums = partials.reshape(ncores, 8, _LANES)[:, :4, 0].sum(axis=0)

    num_pos = sums[0]
    focal_sum = sums[1]
    l1_xy_sum = sums[2]
    l1_wh_sum = sums[3]
    # TODO(synk): real CenterNet training clamps num_pos >= 1; kept unclamped
    # here for exact parity with the PyTorch module (num_pos == 0 -> inf/NaN).
    loss_s = -focal_sum / num_pos
    loss_xy = l1_xy_sum / num_pos
    loss_wh = l1_wh_sum / num_pos
    loss = loss_s + loss_xy + loss_wh
    return loss, loss_s, loss_xy, loss_wh


def _reference(gt_box, pred):
    """Pure-JAX reference mirroring the PyTorch forward."""
    hm = gt_box['hm']
    pred_s = pred[:, 0:1, ...]
    pos_inds = (hm == 1.0).astype(jnp.float32)
    neg_inds = (hm < 1.0).astype(jnp.float32)
    neg_weights = (1.0 - hm) ** 4
    pos_loss = jnp.log(pred_s) * (1.0 - pred_s) ** 2 * pos_inds
    neg_loss = jnp.log(1.0 - pred_s) * pred_s ** 2 * neg_weights * neg_inds
    num_pos = pos_inds.sum()
    loss_s = -(pos_loss.sum() + neg_loss.sum()) / num_pos
    mask = gt_box['dense_mask']
    loss_xy = jnp.sum(jnp.abs(pred[:, 1:3] * mask - gt_box['dense_xy'] * mask)) / num_pos
    loss_wh = jnp.sum(jnp.abs(pred[:, 3:] * mask - gt_box['dense_wh'] * mask)) / num_pos
    return loss_s + loss_xy + loss_wh, loss_s, loss_xy, loss_wh


def _make_inputs(key, B, H, W):
    k_hm, k_score, k_reg, k_xy, k_wh, k_mask = jax.random.split(key, 6)
    hm = jax.random.uniform(k_hm, (B, 1, H, W), jnp.float32,
                            minval=0.0, maxval=0.999)
    hm = hm.at[:, 0, 3, 5].set(1.0)
    hm = hm.at[:, 0, H - 3, W - 5].set(1.0)
    pred_score = jax.random.uniform(k_score, (B, 1, H, W), jnp.float32,
                                    minval=1e-3, maxval=1.0 - 1e-3)
    pred_reg = jax.random.normal(k_reg, (B, 4, H, W), jnp.float32)
    pred = jnp.concatenate([pred_score, pred_reg], axis=1)   # (B, 5, H, W)
    dense_xy = jax.random.normal(k_xy, (B, 2, H, W), jnp.float32)
    dense_wh = jax.random.normal(k_wh, (B, 2, H, W), jnp.float32)
    dense_mask = (jax.random.uniform(k_mask, (B, 2, H, W)) > 0.5).astype(jnp.float32)
    gt_box = {'hm': hm, 'dense_xy': dense_xy, 'dense_wh': dense_wh,
              'dense_mask': dense_mask}
    return gt_box, pred


if __name__ == "__main__":
    key = jax.random.PRNGKey(0)
    configs = [
        # (B, H, W, tile_override)
        (2, 64, 64, None),   # row path, auto tile -> even 2-core split
        (2, 48, 64, 8),      # row path, 3 blocks -> clamped dummy tail step
        (2, 16, 32, 128),    # lane fallback path (HW % 1024 != 0)
    ]
    for i, (B, H, W, tile_override) in enumerate(configs):
        key, sub = jax.random.split(key)
        gt_box, pred = _make_inputs(sub, B, H, W)
        got = location_box_centernet_loss(gt_box, pred, tile_override=tile_override)
        got = jax.block_until_ready(got)
        want = _reference(gt_box, pred)
        for g, w in zip(got, want):
            assert jnp.allclose(g, w, rtol=1e-4, atol=1e-5), (i, g, w)
    print("KERNEL_OK")
</pallas_src>

<mosaic_0001>
module attributes {stable_mosaic.version = 11 : i64} {
  func.func @kernel(%arg0: i32, %arg1: i32, %arg2: memref<2x16x128xf32, #tpu.memory_space<vmem>>, %arg3: memref<2x16x128xf32, #tpu.memory_space<vmem>>, %arg4: memref<2x16x128xf32, #tpu.memory_space<vmem>>, %arg5: memref<2x16x128xf32, #tpu.memory_space<vmem>>, %arg6: memref<2x16x128xf32, #tpu.memory_space<vmem>>, %arg7: memref<2x16x128xf32, #tpu.memory_space<vmem>>, %arg8: memref<2x16x128xf32, #tpu.memory_space<vmem>>, %arg9: memref<2x16x128xf32, #tpu.memory_space<vmem>>, %arg10: memref<2x16x128xf32, #tpu.memory_space<vmem>>, %arg11: memref<2x16x128xf32, #tpu.memory_space<vmem>>, %arg12: memref<2x16x128xf32, #tpu.memory_space<vmem>>, %arg13: memref<2x16x128xf32, #tpu.memory_space<vmem>>, %arg14: memref<32x128xf32, #tpu.memory_space<vmem>>) attributes {dimension_semantics = [#tpu.dimension_semantics<parallel>, #tpu.dimension_semantics<arbitrary>], iteration_bounds = array<i64: 2, 1>, scalar_prefetch = 0 : i64, scratch_operands = 0 : i64, tpu.core_type = #tpu.core_type<tc>, window_params = [{transform_indices = @transform_0, window_bounds = array<i64: 2, 16, 128>}, {transform_indices = @transform_1, window_bounds = array<i64: 2, 16, 128>}, {transform_indices = @transform_2, window_bounds = array<i64: 2, 16, 128>}, {transform_indices = @transform_3, window_bounds = array<i64: 2, 16, 128>}, {transform_indices = @transform_4, window_bounds = array<i64: 2, 16, 128>}, {transform_indices = @transform_5, window_bounds = array<i64: 2, 16, 128>}, {transform_indices = @transform_6, window_bounds = array<i64: 2, 16, 128>}, {transform_indices = @transform_7, window_bounds = array<i64: 2, 16, 128>}, {transform_indices = @transform_8, window_bounds = array<i64: 2, 16, 128>}, {transform_indices = @transform_9, window_bounds = array<i64: 2, 16, 128>}, {transform_indices = @transform_10, window_bounds = array<i64: 2, 16, 128>}, {transform_indices = @transform_11, window_bounds = array<i64: 2, 16, 128>}, {transform_indices = @transform_12, window_bounds = array<i64: 32, 128>}]} {
    %c0_i32 = arith.constant 0 : i32
    %0 = arith.cmpi eq, %arg1, %c0_i32 : i32
    %1 = arith.extui %0 : i1 to i32
    %c0_i32_0 = arith.constant 0 : i32
    %2 = arith.cmpi ne, %1, %c0_i32_0 : i32
    scf.if %2 {
      %cst_61 = arith.constant 0.000000e+00 : f32
      %75 = vector.broadcast %cst_61 : f32 to vector<32x128xf32>
      %c0_62 = arith.constant 0 : index
      %c0_63 = arith.constant 0 : index
      %76 = vector.load %arg14[%c0_62, %c0_63] : memref<32x128xf32, #tpu.memory_space<vmem>>, vector<32x128xf32>
      tpu.vector_store %arg14[%c0_62, %c0_63], %75 {strides = array<i32>} : memref<32x128xf32, #tpu.memory_space<vmem>>, vector<32x128xf32>,
    } else {
    }
    %c0 = arith.constant 0 : index
    %c0_1 = arith.constant 0 : index
    %c0_2 = arith.constant 0 : index
    %3 = vector.load %arg2[%c0, %c0_1, %c0_2] : memref<2x16x128xf32, #tpu.memory_space<vmem>>, vector<2x16x128xf32>
    %c0_3 = arith.constant 0 : index
    %c0_4 = arith.constant 0 : index
    %c0_5 = arith.constant 0 : index
    %4 = vector.load %arg3[%c0_3, %c0_4, %c0_5] : memref<2x16x128xf32, #tpu.memory_space<vmem>>, vector<2x16x128xf32>
    %cst = arith.constant 1.000000e+00 : f32
    %5 = vector.broadcast %cst : f32 to vector<2x16x128xf32>
    %6 = arith.cmpf oeq, %3, %5 : vector<2x16x128xf32>
    %cst_6 = arith.constant 1.000000e+00 : f32
    %7 = vector.broadcast %cst_6 : f32 to vector<2x16x128xf32>
    %8 = arith.subf %7, %3 : vector<2x16x128xf32>
    %9 = arith.mulf %8, %8 : vector<2x16x128xf32>
    %10 = arith.mulf %9, %9 : vector<2x16x128xf32>
    %cst_7 = arith.constant 1.000000e+00 : f32
    %11 = vector.broadcast %cst_7 : f32 to vector<2x16x128xf32>
    %12 = arith.subf %11, %4 : vector<2x16x128xf32>
    %13 = math.log %4 : vector<2x16x128xf32>
    %14 = arith.mulf %12, %12 : vector<2x16x128xf32>
    %15 = arith.mulf %13, %14 : vector<2x16x128xf32>
    %16 = math.log %12 : vector<2x16x128xf32>
    %17 = arith.mulf %4, %4 : vector<2x16x128xf32>
    %18 = arith.mulf %16, %17 : vector<2x16x128xf32>
    %19 = arith.mulf %18, %10 : vector<2x16x128xf32>
    %cst_8 = arith.constant 1.000000e+00 : f32
    %20 = vector.broadcast %cst_8 : f32 to vector<2x16x128xf32>
    %21 = arith.cmpf olt, %3, %20 : vector<2x16x128xf32>
    %cst_9 = arith.constant 0.000000e+00 : f32
    %22 = vector.broadcast %cst_9 : f32 to vector<2x16x128xf32>
    %23 = arith.select %21, %19, %22 : vector<2x16x128xi1>, vector<2x16x128xf32>
    %24 = arith.select %6, %15, %23 : vector<2x16x128xi1>, vector<2x16x128xf32>
    %25 = arith.extui %6 : vector<2x16x128xi1> to vector<2x16x128xi32>
    %26 = arith.sitofp %25 : vector<2x16x128xi32> to vector<2x16x128xf32>
    %c0_10 = arith.constant 0 : index
    %c0_11 = arith.constant 0 : index
    %c0_12 = arith.constant 0 : index
    %27 = vector.load %arg12[%c0_10, %c0_11, %c0_12] : memref<2x16x128xf32, #tpu.memory_space<vmem>>, vector<2x16x128xf32>
    %c0_13 = arith.constant 0 : index
    %c0_14 = arith.constant 0 : index
    %c0_15 = arith.constant 0 : index
    %28 = vector.load %arg13[%c0_13, %c0_14, %c0_15] : memref<2x16x128xf32, #tpu.memory_space<vmem>>, vector<2x16x128xf32>
    %c0_16 = arith.constant 0 : index
    %c0_17 = arith.constant 0 : index
    %c0_18 = arith.constant 0 : index
    %29 = vector.load %arg4[%c0_16, %c0_17, %c0_18] : memref<2x16x128xf32, #tpu.memory_space<vmem>>, vector<2x16x128xf32>
    %c0_19 = arith.constant 0 : index
    %c0_20 = arith.constant 0 : index
    %c0_21 = arith.constant 0 : index
    %30 = vector.load %arg8[%c0_19, %c0_20, %c0_21] : memref<2x16x128xf32, #tpu.memory_space<vmem>>, vector<2x16x128xf32>
    %31 = arith.subf %29, %30 : vector<2x16x128xf32>
    %32 = math.absf %31 : vector<2x16x128xf32>
    %33 = arith.mulf %32, %27 : vector<2x16x128xf32>
    %c0_22 = arith.constant 0 : index
    %c0_23 = arith.constant 0 : index
    %c0_24 = arith.constant 0 : index
    %34 = vector.load %arg5[%c0_22, %c0_23, %c0_24] : memref<2x16x128xf32, #tpu.memory_space<vmem>>, vector<2x16x128xf32>
    %c0_25 = arith.constant 0 : index
    %c0_26 = arith.constant 0 : index
    %c0_27 = arith.constant 0 : index
    %35 = vector.load %arg9[%c0_25, %c0_26, %c0_27] : memref<2x16x128xf32, #tpu.memory_space<vmem>>, vector<2x16x128xf32>
    %36 = arith.subf %34, %35 : vector<2x16x128xf32>
    %37 = math.absf %36 : vector<2x16x128xf32>
    %38 = arith.mulf %37, %28 : vector<2x16x128xf32>
    %39 = arith.addf %33, %38 : vector<2x16x128xf32>
    %c0_28 = arith.constant 0 : index
    %c0_29 = arith.constant 0 : index
    %c0_30 = arith.constant 0 : index
    %40 = vector.load %arg6[%c0_28, %c0_29, %c0_30] : memref<2x16x128xf32, #tpu.memory_space<vmem>>, vector<2x16x128xf32>
    %c0_31 = arith.constant 0 : index
    %c0_32 = arith.constant 0 : index
    %c0_33 = arith.constant 0 : index
    %41 = vector.load %arg10[%c0_31, %c0_32, %c0_33] : memref<2x16x128xf32, #tpu.memory_space<vmem>>, vector<2x16x128xf32>
    %42 = arith.subf %40, %41 : vector<2x16x128xf32>
    %43 = math.absf %42 : vector<2x16x128xf32>
    %44 = arith.mulf %43, %27 : vector<2x16x128xf32>
    %c0_34 = arith.constant 0 : index
    %c0_35 = arith.constant 0 : index
    %c0_36 = arith.constant 0 : index
    %45 = vector.load %arg7[%c0_34, %c0_35, %c0_36] : memref<2x16x128xf32, #tpu.memory_space<vmem>>, vector<2x16x128xf32>
    %c0_37 = arith.constant 0 : index
    %c0_38 = arith.constant 0 : index
    %c0_39 = arith.constant 0 : index
    %46 = vector.load %arg11[%c0_37, %c0_38, %c0_39] : memref<2x16x128xf32, #tpu.memory_space<vmem>>, vector<2x16x128xf32>
    %47 = arith.subf %45, %46 : vector<2x16x128xf32>
    %48 = math.absf %47 : vector<2x16x128xf32>
    %49 = arith.mulf %48, %28 : vector<2x16x128xf32>
    %50 = arith.addf %44, %49 : vector<2x16x128xf32>
    %c0_40 = arith.constant 0 : index
    %c0_41 = arith.constant 0 : index
    %51 = vector.load %arg14[%c0_40, %c0_41] : memref<32x128xf32, #tpu.memory_space<vmem>>, vector<8x128xf32>
    %cst_42 = arith.constant dense<0.000000e+00> : vector<16x128xf32>
    %52 = vector.multi_reduction <add>, %26, %cst_42 [0] : vector<2x16x128xf32> to vector<16x128xf32>
    %53 = vector.shape_cast %52 : vector<16x128xf32> to vector<2x8x128xf32>
    %cst_43 = arith.constant dense<0.000000e+00> : vector<8x128xf32>
    %54 = vector.multi_reduction <add>, %53, %cst_43 [0] : vector<2x8x128xf32> to vector<8x128xf32>
    %55 = arith.addf %51, %54 : vector<8x128xf32>
    %c0_44 = arith.constant 0 : index
    %c0_45 = arith.constant 0 : index
    %56 = vector.load %arg14[%c0_44, %c0_45] : memref<32x128xf32, #tpu.memory_space<vmem>>, vector<8x128xf32>
    tpu.vector_store %arg14[%c0_44, %c0_45], %55 {strides = array<i32>} : memref<32x128xf32, #tpu.memory_space<vmem>>, vector<8x128xf32>,
    %c8 = arith.constant 8 : index
    %c0_46 = arith.constant 0 : index
    %57 = vector.load %arg14[%c8, %c0_46] : memref<32x128xf32, #tpu.memory_space<vmem>>, vector<8x128xf32>
    %cst_47 = arith.constant dense<0.000000e+00> : vector<16x128xf32>
    %58 = vector.multi_reduction <add>, %24, %cst_47 [0] : vector<2x16x128xf32> to vector<16x128xf32>
    %59 = vector.shape_cast %58 : vector<16x128xf32> to vector<2x8x128xf32>
    %cst_48 = arith.constant dense<0.000000e+00> : vector<8x128xf32>
    %60 = vector.multi_reduction <add>, %59, %cst_48 [0] : vector<2x8x128xf32> to vector<8x128xf32>
    %61 = arith.addf %57, %60 : vector<8x128xf32>
    %c8_49 = arith.constant 8 : index
    %c0_50 = arith.constant 0 : index
    %62 = vector.load %arg14[%c8_49, %c0_50] : memref<32x128xf32, #tpu.memory_space<vmem>>, vector<8x128xf32>
    tpu.vector_store %arg14[%c8_49, %c0_50], %61 {strides = array<i32>} : memref<32x128xf32, #tpu.memory_space<vmem>>, vector<8x128xf32>,
    %c16 = arith.constant 16 : index
    %c0_51 = arith.constant 0 : index
    %63 = vector.load %arg14[%c16, %c0_51] : memref<32x128xf32, #tpu.memory_space<vmem>>, vector<8x128xf32>
    %cst_52 = arith.constant dense<0.000000e+00> : vector<16x128xf32>
    %64 = vector.multi_reduction <add>, %39, %cst_52 [0] : vector<2x16x128xf32> to vector<16x128xf32>
    %65 = vector.shape_cast %64 : vector<16x128xf32> to vector<2x8x128xf32>
    %cst_53 = arith.constant dense<0.000000e+00> : vector<8x128xf32>
    %66 = vector.multi_reduction <add>, %65, %cst_53 [0] : vector<2x8x128xf32> to vector<8x128xf32>
    %67 = arith.addf %63, %66 : vector<8x128xf32>
    %c16_54 = arith.constant 16 : index
    %c0_55 = arith.constant 0 : index
    %68 = vector.load %arg14[%c16_54, %c0_55] : memref<32x128xf32, #tpu.memory_space<vmem>>, vector<8x128xf32>
    tpu.vector_store %arg14[%c16_54, %c0_55], %67 {strides = array<i32>} : memref<32x128xf32, #tpu.memory_space<vmem>>, vector<8x128xf32>,
    %c24 = arith.constant 24 : index
    %c0_56 = arith.constant 0 : index
    %69 = vector.load %arg14[%c24, %c0_56] : memref<32x128xf32, #tpu.memory_space<vmem>>, vector<8x128xf32>
    %cst_57 = arith.constant dense<0.000000e+00> : vector<16x128xf32>
    %70 = vector.multi_reduction <add>, %50, %cst_57 [0] : vector<2x16x128xf32> to vector<16x128xf32>
    %71 = vector.shape_cast %70 : vector<16x128xf32> to vector<2x8x128xf32>
    %cst_58 = arith.constant dense<0.000000e+00> : vector<8x128xf32>
    %72 = vector.multi_reduction <add>, %71, %cst_58 [0] : vector<2x8x128xf32> to vector<8x128xf32>
    %73 = arith.addf %69, %72 : vector<8x128xf32>
    %c24_59 = arith.constant 24 : index
    %c0_60 = arith.constant 0 : index
    %74 = vector.load %arg14[%c24_59, %c0_60] : memref<32x128xf32, #tpu.memory_space<vmem>>, vector<8x128xf32>
    tpu.vector_store %arg14[%c24_59, %c0_60], %73 {strides = array<i32>} : memref<32x128xf32, #tpu.memory_space<vmem>>, vector<8x128xf32>,
    return
  }
  func.func @transform_0(%arg0: i32, %arg1: i32) -> (i32, i32, i32) {
    %c1_i32 = arith.constant 1 : i32
    %0 = arith.muli %arg0, %c1_i32 : i32
    %1 = arith.addi %0, %arg1 : i32
    %c1_i32_0 = arith.constant 1 : i32
    %2 = arith.minsi %1, %c1_i32_0 : i32
    %c0_i32 = arith.constant 0 : i32
    %3 = arith.addi %c0_i32, %2 : i32
    %c0_i32_1 = arith.constant 0 : i32
    %c0_i32_2 = arith.constant 0 : i32
    %c0_i32_3 = arith.constant 0 : i32
    return %c0_i32_1, %3, %c0_i32_2 : i32, i32, i32
  }
  func.func @transform_1(%arg0: i32, %arg1: i32) -> (i32, i32, i32) {
    %c1_i32 = arith.constant 1 : i32
    %0 = arith.muli %arg0, %c1_i32 : i32
    %1 = arith.addi %0, %arg1 : i32
    %c1_i32_0 = arith.constant 1 : i32
    %2 = arith.minsi %1, %c1_i32_0 : i32
    %c0_i32 = arith.constant 0 : i32
    %3 = arith.addi %c0_i32, %2 : i32
    %c0_i32_1 = arith.constant 0 : i32
    %c0_i32_2 = arith.constant 0 : i32
    %c0_i32_3 = arith.constant 0 : i32
    return %c0_i32_1, %3, %c0_i32_2 : i32, i32, i32
  }
  func.func @transform_2(%arg0: i32, %arg1: i32) -> (i32, i32, i32) {
    %c1_i32 = arith.constant 1 : i32
    %0 = arith.muli %arg0, %c1_i32 : i32
    %1 = arith.addi %0, %arg1 : i32
    %c1_i32_0 = arith.constant 1 : i32
    %2 = arith.minsi %1, %c1_i32_0 : i32
    %c2_i32 = arith.constant 2 : i32
    %3 = arith.addi %c2_i32, %2 : i32
    %c0_i32 = arith.constant 0 : i32
    %c0_i32_1 = arith.constant 0 : i32
    %c0_i32_2 = arith.constant 0 : i32
    return %c0_i32, %3, %c0_i32_1 : i32, i32, i32
  }
  func.func @transform_3(%arg0: i32, %arg1: i32) -> (i32, i32, i32) {
    %c1_i32 = arith.constant 1 : i32
    %0 = arith.muli %arg0, %c1_i32 : i32
    %1 = arith.addi %0, %arg1 : i32
    %c1_i32_0 = arith.constant 1 : i32
    %2 = arith.minsi %1, %c1_i32_0 : i32
    %c4_i32 = arith.constant 4 : i32
    %3 = arith.addi %c4_i32, %2 : i32
    %c0_i32 = arith.constant 0 : i32
    %c0_i32_1 = arith.constant 0 : i32
    %c0_i32_2 = arith.constant 0 : i32
    return %c0_i32, %3, %c0_i32_1 : i32, i32, i32
  }
  func.func @transform_4(%arg0: i32, %arg1: i32) -> (i32, i32, i32) {
    %c1_i32 = arith.constant 1 : i32
    %0 = arith.muli %arg0, %c1_i32 : i32
    %1 = arith.addi %0, %arg1 : i32
    %c1_i32_0 = arith.constant 1 : i32
    %2 = arith.minsi %1, %c1_i32_0 : i32
    %c6_i32 = arith.constant 6 : i32
    %3 = arith.addi %c6_i32, %2 : i32
    %c0_i32 = arith.constant 0 : i32
    %c0_i32_1 = arith.constant 0 : i32
    %c0_i32_2 = arith.constant 0 : i32
    return %c0_i32, %3, %c0_i32_1 : i32, i32, i32
  }
  func.func @transform_5(%arg0: i32, %arg1: i32) -> (i32, i32, i32) {
    %c1_i32 = arith.constant 1 : i32
    %0 = arith.muli %arg0, %c1_i32 : i32
    %1 = arith.addi %0, %arg1 : i32
    %c1_i32_0 = arith.constant 1 : i32
    %2 = arith.minsi %1, %c1_i32_0 : i32
    %c8_i32 = arith.constant 8 : i32
    %3 = arith.addi %c8_i32, %2 : i32
    %c0_i32 = arith.constant 0 : i32
    %c0_i32_1 = arith.constant 0 : i32
    %c0_i32_2 = arith.constant 0 : i32
    return %c0_i32, %3, %c0_i32_1 : i32, i32, i32
  }
  func.func @transform_6(%arg0: i32, %arg1: i32) -> (i32, i32, i32) {
    %c1_i32 = arith.constant 1 : i32
    %0 = arith.muli %arg0, %c1_i32 : i32
    %1 = arith.addi %0, %arg1 : i32
    %c1_i32_0 = arith.constant 1 : i32
    %2 = arith.minsi %1, %c1_i32_0 : i32
    %c0_i32 = arith.constant 0 : i32
    %3 = arith.addi %c0_i32, %2 : i32
    %c0_i32_1 = arith.constant 0 : i32
    %c0_i32_2 = arith.constant 0 : i32
    %c0_i32_3 = arith.constant 0 : i32
    return %c0_i32_1, %3, %c0_i32_2 : i32, i32, i32
  }
  func.func @transform_7(%arg0: i32, %arg1: i32) -> (i32, i32, i32) {
    %c1_i32 = arith.constant 1 : i32
    %0 = arith.muli %arg0, %c1_i32 : i32
    %1 = arith.addi %0, %arg1 : i32
    %c1_i32_0 = arith.constant 1 : i32
    %2 = arith.minsi %1, %c1_i32_0 : i32
    %c2_i32 = arith.constant 2 : i32
    %3 = arith.addi %c2_i32, %2 : i32
    %c0_i32 = arith.constant 0 : i32
    %c0_i32_1 = arith.constant 0 : i32
    %c0_i32_2 = arith.constant 0 : i32
    return %c0_i32, %3, %c0_i32_1 : i32, i32, i32
  }
  func.func @transform_8(%arg0: i32, %arg1: i32) -> (i32, i32, i32) {
    %c1_i32 = arith.constant 1 : i32
    %0 = arith.muli %arg0, %c1_i32 : i32
    %1 = arith.addi %0, %arg1 : i32
    %c1_i32_0 = arith.constant 1 : i32
    %2 = arith.minsi %1, %c1_i32_0 : i32
    %c0_i32 = arith.constant 0 : i32
    %3 = arith.addi %c0_i32, %2 : i32
    %c0_i32_1 = arith.constant 0 : i32
    %c0_i32_2 = arith.constant 0 : i32
    %c0_i32_3 = arith.constant 0 : i32
    return %c0_i32_1, %3, %c0_i32_2 : i32, i32, i32
  }
  func.func @transform_9(%arg0: i32, %arg1: i32) -> (i32, i32, i32) {
    %c1_i32 = arith.constant 1 : i32
    %0 = arith.muli %arg0, %c1_i32 : i32
    %1 = arith.addi %0, %arg1 : i32
    %c1_i32_0 = arith.constant 1 : i32
    %2 = arith.minsi %1, %c1_i32_0 : i32
    %c2_i32 = arith.constant 2 : i32
    %3 = arith.addi %c2_i32, %2 : i32
    %c0_i32 = arith.constant 0 : i32
    %c0_i32_1 = arith.constant 0 : i32
    %c0_i32_2 = arith.constant 0 : i32
    return %c0_i32, %3, %c0_i32_1 : i32, i32, i32
  }
  func.func @transform_10(%arg0: i32, %arg1: i32) -> (i32, i32, i32) {
    %c1_i32 = arith.constant 1 : i32
    %0 = arith.muli %arg0, %c1_i32 : i32
    %1 = arith.addi %0, %arg1 : i32
    %c1_i32_0 = arith.constant 1 : i32
    %2 = arith.minsi %1, %c1_i32_0 : i32
    %c0_i32 = arith.constant 0 : i32
    %3 = arith.addi %c0_i32, %2 : i32
    %c0_i32_1 = arith.constant 0 : i32
    %c0_i32_2 = arith.constant 0 : i32
    %c0_i32_3 = arith.constant 0 : i32
    return %c0_i32_1, %3, %c0_i32_2 : i32, i32, i32
  }
  func.func @transform_11(%arg0: i32, %arg1: i32) -> (i32, i32, i32) {
    %c1_i32 = arith.constant 1 : i32
    %0 = arith.muli %arg0, %c1_i32 : i32
    %1 = arith.addi %0, %arg1 : i32
    %c1_i32_0 = arith.constant 1 : i32
    %2 = arith.minsi %1, %c1_i32_0 : i32
    %c2_i32 = arith.constant 2 : i32
    %3 = arith.addi %c2_i32, %2 : i32
    %c0_i32 = arith.constant 0 : i32
    %c0_i32_1 = arith.constant 0 : i32
    %c0_i32_2 = arith.constant 0 : i32
    return %c0_i32, %3, %c0_i32_1 : i32, i32, i32
  }
  func.func @transform_12(%arg0: i32, %arg1: i32) -> (i32, i32) {
    %c0_i32 = arith.constant 0 : i32
    %c0_i32_0 = arith.constant 0 : i32
    return %arg0, %c0_i32 : i32, i32
  }
}

</mosaic_0001>

<llo_original>
// kernel: tpu_custom_call.1
$region0: #{tpu_custom_call.1}
  #allocation0 [shape = 'u32[]', space=smem, size = 0x4, offset = 0x4, fixed_abs, tag = 'smem constant byte address 0x4 - core index']
  #allocation1 [shape = 'u32[144,128]{1,0:T(1,128)}', space=vmem, size = 0x12000, scoped, tag = 'internal scratch']
  #allocation23 [shape = 's32[]', space=sflag, size = 0x4, offset = 0, fixed_abs, tag = 'sflag constant byte address 0x0 - dummy sync flag']
  #allocation25 [shape = 's32[]', space=sflag, size = 0x4, offset = 0, fixed_abs, tag = 'sflag constant byte address 0x0 - dummy sync flag']
  #allocation27 [shape = 's32[]', space=sflag, size = 0x4, offset = 0, fixed_abs, tag = 'sflag constant byte address 0x0 - dummy sync flag']
  #allocation29 [shape = 's32[]', space=sflag, size = 0x4, offset = 0, fixed_abs, tag = 'sflag constant byte address 0x0 - dummy sync flag']
  #allocation31 [shape = 's32[]', space=sflag, size = 0x4, offset = 0, fixed_abs, tag = 'sflag constant byte address 0x0 - dummy sync flag']
  #allocation33 [shape = 's32[]', space=sflag, size = 0x4, offset = 0, fixed_abs, tag = 'sflag constant byte address 0x0 - dummy sync flag']
  #allocation35 [shape = 's32[]', space=sflag, size = 0x4, offset = 0, fixed_abs, tag = 'sflag constant byte address 0x0 - dummy sync flag']
  #allocation37 [shape = 's32[]', space=sflag, size = 0x4, offset = 0, fixed_abs, tag = 'sflag constant byte address 0x0 - dummy sync flag']
  #allocation39 [shape = 's32[]', space=sflag, size = 0x4, offset = 0, fixed_abs, tag = 'sflag constant byte address 0x0 - dummy sync flag']
  #allocation41 [shape = 's32[]', space=sflag, size = 0x4, offset = 0, fixed_abs, tag = 'sflag constant byte address 0x0 - dummy sync flag']
  #allocation43 [shape = 's32[]', space=sflag, size = 0x4, offset = 0, fixed_abs, tag = 'sflag constant byte address 0x0 - dummy sync flag']
  #allocation45 [shape = 's32[]', space=sflag, size = 0x4, offset = 0, fixed_abs, tag = 'sflag constant byte address 0x0 - dummy sync flag']
  %s0 = inlined_call_operand.hbm [shape: f32[2,32,128], index: 0, kind: input, shape index: {}]
  %s1 = inlined_call_operand.hbm [shape: f32[2,160,128], index: 1, kind: input, shape index: {}]
  %s2 = inlined_call_operand.hbm [shape: f32[2,160,128], index: 2, kind: input, shape index: {}]
  %s3 = inlined_call_operand.hbm [shape: f32[2,160,128], index: 3, kind: input, shape index: {}]
  %s4 = inlined_call_operand.hbm [shape: f32[2,160,128], index: 4, kind: input, shape index: {}]
  %s5 = inlined_call_operand.hbm [shape: f32[2,160,128], index: 5, kind: input, shape index: {}]
  %s6 = inlined_call_operand.hbm [shape: f32[2,64,128], index: 6, kind: input, shape index: {}]
  %s7 = inlined_call_operand.hbm [shape: f32[2,64,128], index: 7, kind: input, shape index: {}]
  %s8 = inlined_call_operand.hbm [shape: f32[2,64,128], index: 8, kind: input, shape index: {}]
  %s9 = inlined_call_operand.hbm [shape: f32[2,64,128], index: 9, kind: input, shape index: {}]
  %s10 = inlined_call_operand.hbm [shape: f32[2,64,128], index: 10, kind: input, shape index: {}]
  %s11 = inlined_call_operand.hbm [shape: f32[2,64,128], index: 11, kind: input, shape index: {}]
  %s12 = inlined_call_operand.hbm [shape: f32[64,128], index: 12, kind: output, shape index: {}]
  %s13 = sld [smem:[#allocation0]]
  $region133: #{tpu_custom_call.1} parent=0
    _
  %s15 = ssub.s32 1, %s13
  %s16 = scalar_select 0, %s15, %s13
  $region1: #{tpu_custom_call.1} parent=0
    #allocation2 [shape = 'u8[32768]{0}', space=vmem, size = 0x8000, scoped, tag = 'input window, operand 0']
    #allocation3 [shape = 's32[2]{0}', space=sflag, size = 0x8, scoped, tag = 'scoped memory for tpu_custom_call.1']
    #allocation4 [shape = 's32[2]{0}', space=sflag, size = 0x8, scoped, tag = 'scoped memory for tpu_custom_call.1']
    #allocation5 [shape = 'u8[32768]{0}', space=vmem, size = 0x8000, scoped, tag = 'input window, operand 1']
    #allocation6 [shape = 's32[2]{0}', space=sflag, size = 0x8, scoped, tag = 'scoped memory for tpu_custom_call.1']
    #allocation7 [shape = 'u8[32768]{0}', space=vmem, size = 0x8000, scoped, tag = 'input window, operand 2']
    #allocation8 [shape = 'u8[32768]{0}', space=vmem, size = 0x8000, scoped, tag = 'input window, operand 3']
    #allocation9 [shape = 's32[2]{0}', space=sflag, size = 0x8, scoped, tag = 'scoped memory for tpu_custom_call.1']
    #allocation10 [shape = 'u8[32768]{0}', space=vmem, size = 0x8000, scoped, tag = 'input window, operand 4']
    #allocation11 [shape = 'u8[32768]{0}', space=vmem, size = 0x8000, scoped, tag = 'input window, operand 5']
    #allocation12 [shape = 's32[2]{0}', space=sflag, size = 0x8, scoped, tag = 'scoped memory for tpu_custom_call.1']
    #allocation13 [shape = 'u8[32768]{0}', space=vmem, size = 0x8000, scoped, tag = 'input window, operand 6']
    #allocation14 [shape = 'u8[32768]{0}', space=vmem, size = 0x8000, scoped, tag = 'input window, operand 7']
    #allocation15 [shape = 's32[2]{0}', space=sflag, size = 0x8, scoped, tag = 'scoped memory for tpu_custom_call.1']
    #allocation16 [shape = 'u8[32768]{0}', space=vmem, size = 0x8000, scoped, tag = 'input window, operand 8']
    #allocation17 [shape = 'u8[32768]{0}', space=vmem, size = 0x8000, scoped, tag = 'input window, operand 9']
    #allocation18 [shape = 's32[2]{0}', space=sflag, size = 0x8, scoped, tag = 'scoped memory for tpu_custom_call.1']
    #allocation19 [shape = 'u8[32768]{0}', space=vmem, size = 0x8000, scoped, tag = 'input window, operand 10']
    #allocation20 [shape = 'u8[32768]{0}', space=vmem, size = 0x8000, scoped, tag = 'input window, operand 11']
    #allocation21 [shape = 's32[2]{0}', space=sflag, size = 0x8, scoped, tag = 'scoped memory for tpu_custom_call.1']
    #allocation22 [shape = 'u8[32768]{0}', space=vmem, size = 0x8000, scoped, tag = 'output window, operand 0']
    %17 = vsyncpa [#allocation3], 0
    %s18 = scalar_lea.sflag [#allocation3], 1
    %19 = vsyncpa %s18, 0
    %20 = vsyncpa [#allocation6], 0
    %s21 = scalar_lea.sflag [#allocation6], 1
    %22 = vsyncpa %s21, 0
    %23 = vsyncpa [#allocation9], 0
    %s24 = scalar_lea.sflag [#allocation9], 1
    %25 = vsyncpa %s24, 0
    %26 = vsyncpa [#allocation12], 0
    %s27 = scalar_lea.sflag [#allocation12], 1
    %28 = vsyncpa %s27, 0
    %29 = vsyncpa [#allocation15], 0
    %s30 = scalar_lea.sflag [#allocation15], 1
    %31 = vsyncpa %s30, 0
    %32 = vsyncpa [#allocation18], 0
    %s33 = scalar_lea.sflag [#allocation18], 1
    %34 = vsyncpa %s33, 0
    %35 = vsyncpa [#allocation21], 0
    %s36 = scalar_lea.sflag [#allocation21], 1
    %37 = vsyncpa %s36, 0
    %38 = vsyncpa [#allocation4], 0
    %s39 = scalar_lea.sflag [#allocation4], 1
    %40 = vsyncpa %s39, 0
    loop: start=0, step=1, limit=4
    $region2: #{tpu_custom_call.1} parent=1 // loop_pre_header
      _
    $region3: #{tpu_custom_call.1} parent=1 // loop_header
      %s42 = sphi 0, %s46
      %p43 = scmp.ge.s32.totalorder %s42, 4
      %s49 = sphi 0, %s61
      %s50 = sphi 0, %s57
      %s51 = sphi 0, %s49
      %s52 = sphi 0, %s50
      %s53 = sphi 0, %s51
      %s54 = sphi 0, %s52
      %s70 = sphi 0, %s72
      %s73 = sphi 0, %s70
      %s74 = sphi 0, %s73
      %s90 = sphi 0, %s74
      %s102 = sphi 0, %s104
      %s105 = sphi 0, %s102
      %s106 = sphi 0, %s105
      %s122 = sphi 0, %s106
      %s136 = sphi 0, %s138
      %s139 = sphi 0, %s136
      %s140 = sphi 0, %s139
      %s156 = sphi 0, %s140
      %s170 = sphi 0, %s172
      %s173 = sphi 0, %s170
      %s174 = sphi 0, %s173
      %s190 = sphi 0, %s174
      %s204 = sphi 0, %s206
      %s207 = sphi 0, %s204
      %s208 = sphi 0, %s207
      %s224 = sphi 0, %s208
      %s238 = sphi 0, %s240
      %s241 = sphi 0, %s238
      %s242 = sphi 0, %s241
      %s258 = sphi 0, %s242
      %s270 = sphi 0, %s272
      %s273 = sphi 0, %s270
      %s274 = sphi 0, %s273
      %s290 = sphi 0, %s274
      %s304 = sphi 0, %s306
      %s307 = sphi 0, %s304
      %s308 = sphi 0, %s307
      %s324 = sphi 0, %s308
      %s336 = sphi 0, %s338
      %s339 = sphi 0, %s336
      %s340 = sphi 0, %s339
      %s356 = sphi 0, %s340
      %s370 = sphi 0, %s372
      %s373 = sphi 0, %s370
      %s374 = sphi 0, %s373
      %s390 = sphi 0, %s374
      %s402 = sphi 0, %s404
      %s405 = sphi 0, %s402
      %s406 = sphi 0, %s405
      %s422 = sphi 0, %s406
      %s436 = sphi 0, %s438
      %s439 = sphi 0, %s436
      %s440 = sphi 0, %s439
      %s456 = sphi 0, %s440
      %s462 = sphi 0, %s464
      %s465 = sphi 0, %s462
      %s466 = sphi 0, %s465
      %s482 = sphi 0, %s466
    $region4: #{tpu_custom_call.1} parent=1 // loop_header_branch
      %45 = sbr.rel (%p43) target = $region8
    $region5: #{tpu_custom_call.1} parent=1 // loop_body
      %s47 = ssub.s32 %s42, 1
      %s48 = ssub.s32 %s42, 2
      %s55 = sadd.s32 1, %s50
      %p56 = scmp.ge.s32.totalorder %s55, 1
      %s57 = scalar_select %p56, 0, %s55
      %s58 = sadd.s32 1, %s49
      %s59 = scalar_select %p56, %s58, %s49
      %p60 = scmp.ge.s32.totalorder %s59, 2
      %s61 = scalar_select %p60, 0, %s59
      %s62 = sadd.s32 %s49, %s50
      %p63 = scmp.lt.s32.totalorder %s62, 1
      %s64 = scalar_select %p63, %s62, 1
      %s65 = sadd.s32 %s61, %s57
      %p66 = scmp.lt.s32.totalorder %s65, 1
      %s67 = scalar_select %p66, %s65, 1
      %s68 = ssub.s32 %s64, %s67
      %p69 = scmp.eq.s32.totalorder %s68, 0
      %s71 = sadd.s32 %s70, 1
      %s72 = scalar_select %p69, %s70, %s71
      %p75 = pneg %p69
      %p76 = scmp.eq.s32.totalorder %s42, 1
      %p77 = por %p75, %p76
      %p78 = scmp.ne.s32.totalorder %s70, %s73
      %p79 = scmp.eq.s32.totalorder %s42, 0
      %p80 = por %p78, %p79
      %p81 = scmp.ne.s32.totalorder %s70, %s73
      %p82 = scmp.eq.s32.totalorder %s47, 1
      %p83 = por %p81, %p82
      %p84 = scmp.ne.s32.totalorder %s73, %s74
      %p85 = scmp.eq.s32.totalorder %s47, 0
      %p86 = por %p84, %p85
      %p87 = scmp.ne.s32.totalorder %s73, %s74
      %p88 = scmp.eq.s32.totalorder %s48, 1
      %p89 = por %p87, %p88
      %p91 = scmp.ne.s32.totalorder %s74, %s90
      %p92 = scmp.eq.s32.totalorder %s48, 0
      %p93 = por %p91, %p92
      %s94 = sadd.s32 %s49, %s50
      %p95 = scmp.lt.s32.totalorder %s94, 1
      %s96 = scalar_select %p95, %s94, 1
      %s97 = sadd.s32 %s61, %s57
      %p98 = scmp.lt.s32.totalorder %s97, 1
      %s99 = scalar_select %p98, %s97, 1
      %s100 = ssub.s32 %s96, %s99
      %p101 = scmp.eq.s32.totalorder %s100, 0
      %s103 = sadd.s32 %s102, 1
      %s104 = scalar_select %p101, %s102, %s103
      %p107 = pneg %p101
      %p108 = scmp.eq.s32.totalorder %s42, 1
      %p109 = por %p107, %p108
      %p110 = scmp.ne.s32.totalorder %s102, %s105
      %p111 = scmp.eq.s32.totalorder %s42, 0
      %p112 = por %p110, %p111
      %p113 = scmp.ne.s32.totalorder %s102, %s105
      %p114 = scmp.eq.s32.totalorder %s47, 1
      %p115 = por %p113, %p114
      %p116 = scmp.ne.s32.totalorder %s105, %s106
      %p117 = scmp.eq.s32.totalorder %s47, 0
      %p118 = por %p116, %p117
      %p119 = scmp.ne.s32.totalorder %s105, %s106
      %p120 = scmp.eq.s32.totalorder %s48, 1
      %p121 = por %p119, %p120
      %p123 = scmp.ne.s32.totalorder %s106, %s122
      %p124 = scmp.eq.s32.totalorder %s48, 0
      %p125 = por %p123, %p124
      %s126 = sadd.s32 %s49, %s50
      %p127 = scmp.lt.s32.totalorder %s126, 1
      %s128 = scalar_select %p127, %s126, 1
      %s129 = sadd.s32 %s128, 2
      %s130 = sadd.s32 %s61, %s57
      %p131 = scmp.lt.s32.totalorder %s130, 1
      %s132 = scalar_select %p131, %s130, 1
      %s133 = sadd.s32 %s132, 2
      %s134 = ssub.s32 %s129, %s133
      %p135 = scmp.eq.s32.totalorder %s134, 0
      %s137 = sadd.s32 %s136, 1
      %s138 = scalar_select %p135, %s136, %s137
      %p141 = pneg %p135
      %p142 = scmp.eq.s32.totalorder %s42, 1
      %p143 = por %p141, %p142
      %p144 = scmp.ne.s32.totalorder %s136, %s139
      %p145 = scmp.eq.s32.totalorder %s42, 0
      %p146 = por %p144, %p145
      %p147 = scmp.ne.s32.totalorder %s136, %s139
      %p148 = scmp.eq.s32.totalorder %s47, 1
      %p149 = por %p147, %p148
      %p150 = scmp.ne.s32.totalorder %s139, %s140
      %p151 = scmp.eq.s32.totalorder %s47, 0
      %p152 = por %p150, %p151
      %p153 = scmp.ne.s32.totalorder %s139, %s140
      %p154 = scmp.eq.s32.totalorder %s48, 1
      %p155 = por %p153, %p154
      %p157 = scmp.ne.s32.totalorder %s140, %s156
      %p158 = scmp.eq.s32.totalorder %s48, 0
      %p159 = por %p157, %p158
      %s160 = sadd.s32 %s49, %s50
      %p161 = scmp.lt.s32.totalorder %s160, 1
      %s162 = scalar_select %p161, %s160, 1
      %s163 = sadd.s32 %s162, 4
      %s164 = sadd.s32 %s61, %s57
      %p165 = scmp.lt.s32.totalorder %s164, 1
      %s166 = scalar_select %p165, %s164, 1
      %s167 = sadd.s32 %s166, 4
      %s168 = ssub.s32 %s163, %s167
      %p169 = scmp.eq.s32.totalorder %s168, 0
      %s171 = sadd.s32 %s170, 1
      %s172 = scalar_select %p169, %s170, %s171
      %p175 = pneg %p169
      %p176 = scmp.eq.s32.totalorder %s42, 1
      %p177 = por %p175, %p176
      %p178 = scmp.ne.s32.totalorder %s170, %s173
      %p179 = scmp.eq.s32.totalorder %s42, 0
      %p180 = por %p178, %p179
      %p181 = scmp.ne.s32.totalorder %s170, %s173
      %p182 = scmp.eq.s32.totalorder %s47, 1
      %p183 = por %p181, %p182
      %p184 = scmp.ne.s32.totalorder %s173, %s174
      %p185 = scmp.eq.s32.totalorder %s47, 0
      %p186 = por %p184, %p185
      %p187 = scmp.ne.s32.totalorder %s173, %s174
      %p188 = scmp.eq.s32.totalorder %s48, 1
      %p189 = por %p187, %p188
      %p191 = scmp.ne.s32.totalorder %s174, %s190
      %p192 = scmp.eq.s32.totalorder %s48, 0
      %p193 = por %p191, %p192
      %s194 = sadd.s32 %s49, %s50
      %p195 = scmp.lt.s32.totalorder %s194, 1
      %s196 = scalar_select %p195, %s194, 1
      %s197 = sadd.s32 %s196, 6
      %s198 = sadd.s32 %s61, %s57
      %p199 = scmp.lt.s32.totalorder %s198, 1
      %s200 = scalar_select %p199, %s198, 1
      %s201 = sadd.s32 %s200, 6
      %s202 = ssub.s32 %s197, %s201
      %p203 = scmp.eq.s32.totalorder %s202, 0
      %s205 = sadd.s32 %s204, 1
      %s206 = scalar_select %p203, %s204, %s205
      %p209 = pneg %p203
      %p210 = scmp.eq.s32.totalorder %s42, 1
      %p211 = por %p209, %p210
      %p212 = scmp.ne.s32.totalorder %s204, %s207
      %p213 = scmp.eq.s32.totalorder %s42, 0
      %p214 = por %p212, %p213
      %p215 = scmp.ne.s32.totalorder %s204, %s207
      %p216 = scmp.eq.s32.totalorder %s47, 1
      %p217 = por %p215, %p216
      %p218 = scmp.ne.s32.totalorder %s207, %s208
      %p219 = scmp.eq.s32.totalorder %s47, 0
      %p220 = por %p218, %p219
      %p221 = scmp.ne.s32.totalorder %s207, %s208
      %p222 = scmp.eq.s32.totalorder %s48, 1
      %p223 = por %p221, %p222
      %p225 = scmp.ne.s32.totalorder %s208, %s224
      %p226 = scmp.eq.s32.totalorder %s48, 0
      %p227 = por %p225, %p226
      %s228 = sadd.s32 %s49, %s50
      %p229 = scmp.lt.s32.totalorder %s228, 1
      %s230 = scalar_select %p229, %s228, 1
      %s231 = sadd.s32 %s230, 8
      %s232 = sadd.s32 %s61, %s57
      %p233 = scmp.lt.s32.totalorder %s232, 1
      %s234 = scalar_select %p233, %s232, 1
      %s235 = sadd.s32 %s234, 8
      %s236 = ssub.s32 %s231, %s235
      %p237 = scmp.eq.s32.totalorder %s236, 0
      %s239 = sadd.s32 %s238, 1
      %s240 = scalar_select %p237, %s238, %s239
      %p243 = pneg %p237
      %p244 = scmp.eq.s32.totalorder %s42, 1
      %p245 = por %p243, %p244
      %p246 = scmp.ne.s32.totalorder %s238, %s241
      %p247 = scmp.eq.s32.totalorder %s42, 0
      %p248 = por %p246, %p247
      %p249 = scmp.ne.s32.totalorder %s238, %s241
      %p250 = scmp.eq.s32.totalorder %s47, 1
      %p251 = por %p249, %p250
      %p252 = scmp.ne.s32.totalorder %s241, %s242
      %p253 = scmp.eq.s32.totalorder %s47, 0
      %p254 = por %p252, %p253
      %p255 = scmp.ne.s32.totalorder %s241, %s242
      %p256 = scmp.eq.s32.totalorder %s48, 1
      %p257 = por %p255, %p256
      %p259 = scmp.ne.s32.totalorder %s242, %s258
      %p260 = scmp.eq.s32.totalorder %s48, 0
      %p261 = por %p259, %p260
      %s262 = sadd.s32 %s49, %s50
      %p263 = scmp.lt.s32.totalorder %s262, 1
      %s264 = scalar_select %p263, %s262, 1
      %s265 = sadd.s32 %s61, %s57
      %p266 = scmp.lt.s32.totalorder %s265, 1
      %s267 = scalar_select %p266, %s265, 1
      %s268 = ssub.s32 %s264, %s267
      %p269 = scmp.eq.s32.totalorder %s268, 0
      %s271 = sadd.s32 %s270, 1
      %s272 = scalar_select %p269, %s270, %s271
      %p275 = pneg %p269
      %p276 = scmp.eq.s32.totalorder %s42, 1
      %p277 = por %p275, %p276
      %p278 = scmp.ne.s32.totalorder %s270, %s273
      %p279 = scmp.eq.s32.totalorder %s42, 0
      %p280 = por %p278, %p279
      %p281 = scmp.ne.s32.totalorder %s270, %s273
      %p282 = scmp.eq.s32.totalorder %s47, 1
      %p283 = por %p281, %p282
      %p284 = scmp.ne.s32.totalorder %s273, %s274
      %p285 = scmp.eq.s32.totalorder %s47, 0
      %p286 = por %p284, %p285
      %p287 = scmp.ne.s32.totalorder %s273, %s274
      %p288 = scmp.eq.s32.totalorder %s48, 1
      %p289 = por %p287, %p288
      %p291 = scmp.ne.s32.totalorder %s274, %s290
      %p292 = scmp.eq.s32.totalorder %s48, 0
      %p293 = por %p291, %p292
      %s294 = sadd.s32 %s49, %s50
      %p295 = scmp.lt.s32.totalorder %s294, 1
      %s296 = scalar_select %p295, %s294, 1
      %s297 = sadd.s32 %s296, 2
      %s298 = sadd.s32 %s61, %s57
      %p299 = scmp.lt.s32.totalorder %s298, 1
      %s300 = scalar_select %p299, %s298, 1
      %s301 = sadd.s32 %s300, 2
      %s302 = ssub.s32 %s297, %s301
      %p303 = scmp.eq.s32.totalorder %s302, 0
      %s305 = sadd.s32 %s304, 1
      %s306 = scalar_select %p303, %s304, %s305
      %p309 = pneg %p303
      %p310 = scmp.eq.s32.totalorder %s42, 1
      %p311 = por %p309, %p310
      %p312 = scmp.ne.s32.totalorder %s304, %s307
      %p313 = scmp.eq.s32.totalorder %s42, 0
      %p314 = por %p312, %p313
      %p315 = scmp.ne.s32.totalorder %s304, %s307
      %p316 = scmp.eq.s32.totalorder %s47, 1
      %p317 = por %p315, %p316
      %p318 = scmp.ne.s32.totalorder %s307, %s308
      %p319 = scmp.eq.s32.totalorder %s47, 0
      %p320 = por %p318, %p319
      %p321 = scmp.ne.s32.totalorder %s307, %s308
      %p322 = scmp.eq.s32.totalorder %s48, 1
      %p323 = por %p321, %p322
      %p325 = scmp.ne.s32.totalorder %s308, %s324
      %p326 = scmp.eq.s32.totalorder %s48, 0
      %p327 = por %p325, %p326
      %s328 = sadd.s32 %s49, %s50
      %p329 = scmp.lt.s32.totalorder %s328, 1
      %s330 = scalar_select %p329, %s328, 1
      %s331 = sadd.s32 %s61, %s57
      %p332 = scmp.lt.s32.totalorder %s331, 1
      %s333 = scalar_select %p332, %s331, 1
      %s334 = ssub.s32 %s330, %s333
      %p335 = scmp.eq.s32.totalorder %s334, 0
      %s337 = sadd.s32 %s336, 1
      %s338 = scalar_select %p335, %s336, %s337
      %p341 = pneg %p335
      %p342 = scmp.eq.s32.totalorder %s42, 1
      %p343 = por %p341, %p342
      %p344 = scmp.ne.s32.totalorder %s336, %s339
      %p345 = scmp.eq.s32.totalorder %s42, 0
      %p346 = por %p344, %p345
      %p347 = scmp.ne.s32.totalorder %s336, %s339
      %p348 = scmp.eq.s32.totalorder %s47, 1
      %p349 = por %p347, %p348
      %p350 = scmp.ne.s32.totalorder %s339, %s340
      %p351 = scmp.eq.s32.totalorder %s47, 0
      %p352 = por %p350, %p351
      %p353 = scmp.ne.s32.totalorder %s339, %s340
      %p354 = scmp.eq.s32.totalorder %s48, 1
      %p355 = por %p353, %p354
      %p357 = scmp.ne.s32.totalorder %s340, %s356
      %p358 = scmp.eq.s32.totalorder %s48, 0
      %p359 = por %p357, %p358
      %s360 = sadd.s32 %s49, %s50
      %p361 = scmp.lt.s32.totalorder %s360, 1
      %s362 = scalar_select %p361, %s360, 1
      %s363 = sadd.s32 %s362, 2
      %s364 = sadd.s32 %s61, %s57
      %p365 = scmp.lt.s32.totalorder %s364, 1
      %s366 = scalar_select %p365, %s364, 1
      %s367 = sadd.s32 %s366, 2
      %s368 = ssub.s32 %s363, %s367
      %p369 = scmp.eq.s32.totalorder %s368, 0
      %s371 = sadd.s32 %s370, 1
      %s372 = scalar_select %p369, %s370, %s371
      %p375 = pneg %p369
      %p376 = scmp.eq.s32.totalorder %s42, 1
      %p377 = por %p375, %p376
      %p378 = scmp.ne.s32.totalorder %s370, %s373
      %p379 = scmp.eq.s32.totalorder %s42, 0
      %p380 = por %p378, %p379
      %p381 = scmp.ne.s32.totalorder %s370, %s373
      %p382 = scmp.eq.s32.totalorder %s47, 1
      %p383 = por %p381, %p382
      %p384 = scmp.ne.s32.totalorder %s373, %s374
      %p385 = scmp.eq.s32.totalorder %s47, 0
      %p386 = por %p384, %p385
      %p387 = scmp.ne.s32.totalorder %s373, %s374
      %p388 = scmp.eq.s32.totalorder %s48, 1
      %p389 = por %p387, %p388
      %p391 = scmp.ne.s32.totalorder %s374, %s390
      %p392 = scmp.eq.s32.totalorder %s48, 0
      %p393 = por %p391, %p392
      %s394 = sadd.s32 %s49, %s50
      %p395 = scmp.lt.s32.totalorder %s394, 1
      %s396 = scalar_select %p395, %s394, 1
      %s397 = sadd.s32 %s61, %s57
      %p398 = scmp.lt.s32.totalorder %s397, 1
      %s399 = scalar_select %p398, %s397, 1
      %s400 = ssub.s32 %s396, %s399
      %p401 = scmp.eq.s32.totalorder %s400, 0
      %s403 = sadd.s32 %s402, 1
      %s404 = scalar_select %p401, %s402, %s403
      %p407 = pneg %p401
      %p408 = scmp.eq.s32.totalorder %s42, 1
      %p409 = por %p407, %p408
      %p410 = scmp.ne.s32.totalorder %s402, %s405
      %p411 = scmp.eq.s32.totalorder %s42, 0
      %p412 = por %p410, %p411
      %p413 = scmp.ne.s32.totalorder %s402, %s405
      %p414 = scmp.eq.s32.totalorder %s47, 1
      %p415 = por %p413, %p414
      %p416 = scmp.ne.s32.totalorder %s405, %s406
      %p417 = scmp.eq.s32.totalorder %s47, 0
      %p418 = por %p416, %p417
      %p419 = scmp.ne.s32.totalorder %s405, %s406
      %p420 = scmp.eq.s32.totalorder %s48, 1
      %p421 = por %p419, %p420
      %p423 = scmp.ne.s32.totalorder %s406, %s422
      %p424 = scmp.eq.s32.totalorder %s48, 0
      %p425 = por %p423, %p424
      %s426 = sadd.s32 %s49, %s50
      %p427 = scmp.lt.s32.totalorder %s426, 1
      %s428 = scalar_select %p427, %s426, 1
      %s429 = sadd.s32 %s428, 2
      %s430 = sadd.s32 %s61, %s57
      %p431 = scmp.lt.s32.totalorder %s430, 1
      %s432 = scalar_select %p431, %s430, 1
      %s433 = sadd.s32 %s432, 2
      %s434 = ssub.s32 %s429, %s433
      %p435 = scmp.eq.s32.totalorder %s434, 0
      %s437 = sadd.s32 %s436, 1
      %s438 = scalar_select %p435, %s436, %s437
      %p441 = pneg %p435
      %p442 = scmp.eq.s32.totalorder %s42, 1
      %p443 = por %p441, %p442
      %p444 = scmp.ne.s32.totalorder %s436, %s439
      %p445 = scmp.eq.s32.totalorder %s42, 0
      %p446 = por %p444, %p445
      %p447 = scmp.ne.s32.totalorder %s436, %s439
      %p448 = scmp.eq.s32.totalorder %s47, 1
      %p449 = por %p447, %p448
      %p450 = scmp.ne.s32.totalorder %s439, %s440
      %p451 = scmp.eq.s32.totalorder %s47, 0
      %p452 = por %p450, %p451
      %p453 = scmp.ne.s32.totalorder %s439, %s440
      %p454 = scmp.eq.s32.totalorder %s48, 1
      %p455 = por %p453, %p454
      %p457 = scmp.ne.s32.totalorder %s440, %s456
      %p458 = scmp.eq.s32.totalorder %s48, 0
      %p459 = por %p457, %p458
      %s460 = ssub.s32 %s49, %s61
      %p461 = scmp.eq.s32.totalorder %s460, 0
      %s463 = sadd.s32 %s462, 1
      %s464 = scalar_select %p461, %s462, %s463
      %p467 = pneg %p461
      %p468 = scmp.eq.s32.totalorder %s42, 1
      %p469 = por %p467, %p468
      %p470 = scmp.ne.s32.totalorder %s462, %s465
      %p471 = scmp.eq.s32.totalorder %s42, 0
      %p472 = por %p470, %p471
      %p473 = scmp.ne.s32.totalorder %s462, %s465
      %p474 = scmp.eq.s32.totalorder %s47, 1
      %p475 = por %p473, %p474
      %p476 = scmp.ne.s32.totalorder %s465, %s466
      %p477 = scmp.eq.s32.totalorder %s47, 0
      %p478 = por %p476, %p477
      %p479 = scmp.ne.s32.totalorder %s465, %s466
      %p480 = scmp.eq.s32.totalorder %s48, 1
      %p481 = por %p479, %p480
      %p483 = scmp.ne.s32.totalorder %s466, %s482
      %p484 = scmp.eq.s32.totalorder %s48, 0
      %p485 = por %p483, %p484
      %p486 = scmp.le.s32.totalorder 1, %s42
      %p487 = scmp.lt.s32.totalorder %s42, 3
      %p488 = pnand %p486, %p487
      %p489 = pneg %p488
      // Predicated region
      $region9: #{tpu_custom_call.1} parent=5 // pred_check
        _
      $region10: #{tpu_custom_call.1} parent=5 // pred_check_branch
        %491 = sbr.rel (%p488) target = $region12
      $region11: #{tpu_custom_call.1} parent=5 // pred_region
        %s492 = ssub.s32 %s42, 1
      $region12: #{tpu_custom_call.1} parent=5 // pred_fallthru
        _
      %p493 = scmp.lt.s32.totalorder %s42, 2
      // Predicated region
      $region13: #{tpu_custom_call.1} parent=5 // pred_check
        %p494 = pneg %p493
      $region14: #{tpu_custom_call.1} parent=5 // pred_check_branch
        %496 = sbr.rel (%p494) target = $region16
      $region15: #{tpu_custom_call.1} parent=5 // pred_region
        // Predicated region
        $region17: #{tpu_custom_call.1} parent=15 // pred_check
          %p497 = pneg %p80
        $region18: #{tpu_custom_call.1} parent=15 // pred_check_branch
          %499 = sbr.rel (%p497) target = $region20
        $region19: #{tpu_custom_call.1} parent=15 // pred_region
          #allocation24 [shape = 'u32[6]{0}', space=smem, size = 0x18, scoped, tag = 'DMA stride descriptor']
          %s500 = sand.u32 %s70, 1
          %s501 = scalar_lea.sflag [#allocation3], %s500
          %s502 = sand.u32 %s70, 1
          %s503 = smul.addr %s502, 32
          %s504 = scalar_lea.vmem [#allocation2], %s503
          %s505 = sadd.s32 %s49, %s50
          %p506 = scmp.lt.s32.totalorder %s505, 1
          %s507 = scalar_select %p506, %s505, 1
          %s508 = smul.u32 2, %s507
          %s510 = ssub.s32 512, 512
          %511 = vsyncadd %s501, %s510
          %s512 = smul.addr %s508, 128
          %s513 = scalar_lea.hbm %s0, %s512
          %s515 = sshll.u32 1, 14
          %s516 = sxor.u32 4294967295, %s515
          %s518 = sld [smem:[#allocation0]]
          %s519 = sadd.s32 2, %s518
          %s521 = sshll.u32 7, 26
          %s522 = sxor.u32 4294967295, %s521
          %s523 = sand.u32 0, %s522
          %s524 = sshll.u32 %s519, 26
          %s525 = sor.u32 %s523, %s524
          %s526 = sshll.u32 %s504, 4
          %s527 = int_to_ptr.vmem [resolvable:$true] %s526
          %533 = sst [smem:[#allocation24]] 512
          %s534 = scalar_lea.smem [#allocation24], 1
          %535 = sst [smem:[%s534]] 256
          %s536 = scalar_lea.smem [#allocation24], 2
          %537 = sst [smem:[%s536]] 2
          %s538 = scalar_lea.smem [#allocation24], 3
          %539 = sst [smem:[%s538]] 128
          %s540 = scalar_lea.smem [#allocation24], 4
          %541 = sst [smem:[%s540]] 128
          %s542 = scalar_lea.smem [#allocation24], 5
          %543 = sst [smem:[%s542]] 8
          %545 = dma.general %s513, 512, %s527, %s501, 131072, [#allocation24], %s525, 0
        $region20: #{tpu_custom_call.1} parent=15 // pred_fallthru
          _
        // Predicated region
        $region21: #{tpu_custom_call.1} parent=15 // pred_check
          %p546 = pneg %p112
        $region22: #{tpu_custom_call.1} parent=15 // pred_check_branch
          %548 = sbr.rel (%p546) target = $region24
        $region23: #{tpu_custom_call.1} parent=15 // pred_region
          #allocation26 [shape = 'u32[6]{0}', space=smem, size = 0x18, scoped, tag = 'DMA stride descriptor']
          %s549 = sand.u32 %s42, 1
          %s550 = scalar_lea.sflag [#allocation6], %s549
          %s551 = sand.u32 %s102, 1
          %s552 = smul.addr %s551, 32
          %s553 = scalar_lea.vmem [#allocation5], %s552
          %s554 = sadd.s32 %s49, %s50
          %p555 = scmp.lt.s32.totalorder %s554, 1
          %s556 = scalar_select %p555, %s554, 1
          %s557 = smul.u32 2, %s556
          %s559 = ssub.s32 512, 512
          %560 = vsyncadd %s550, %s559
          %s561 = smul.addr %s557, 128
          %s562 = scalar_lea.hbm %s1, %s561
          %s564 = sshll.u32 1, 14
          %s565 = sxor.u32 4294967295, %s564
          %s567 = sld [smem:[#allocation0]]
          %s568 = sadd.s32 2, %s567
          %s570 = sshll.u32 7, 26
          %s571 = sxor.u32 4294967295, %s570
          %s572 = sand.u32 0, %s571
          %s573 = sshll.u32 %s568, 26
          %s574 = sor.u32 %s572, %s573
          %s575 = sshll.u32 %s553, 4
          %s576 = int_to_ptr.vmem [resolvable:$true] %s575
          %582 = sst [smem:[#allocation26]] 2560
          %s583 = scalar_lea.smem [#allocation26], 1
          %584 = sst [smem:[%s583]] 256
          %s585 = scalar_lea.smem [#allocation26], 2
          %586 = sst [smem:[%s585]] 2
          %s587 = scalar_lea.smem [#allocation26], 3
          %588 = sst [smem:[%s587]] 128
          %s589 = scalar_lea.smem [#allocation26], 4
          %590 = sst [smem:[%s589]] 128
          %s591 = scalar_lea.smem [#allocation26], 5
          %592 = sst [smem:[%s591]] 8
          %594 = dma.general %s562, 512, %s576, %s550, 131072, [#allocation26], %s574, 0
        $region24: #{tpu_custom_call.1} parent=15 // pred_fallthru
          _
        // Predicated region
        $region25: #{tpu_custom_call.1} parent=15 // pred_check
          %p595 = pneg %p146
        $region26: #{tpu_custom_call.1} parent=15 // pred_check_branch
          %597 = sbr.rel (%p595) target = $region28
        $region27: #{tpu_custom_call.1} parent=15 // pred_region
          #allocation28 [shape = 'u32[6]{0}', space=smem, size = 0x18, scoped, tag = 'DMA stride descriptor']
          %s598 = sand.u32 %s42, 1
          %s599 = scalar_lea.sflag [#allocation6], %s598
          %s600 = sand.u32 %s136, 1
          %s601 = smul.addr %s600, 32
          %s602 = scalar_lea.vmem [#allocation7], %s601
          %s603 = sadd.s32 %s49, %s50
          %p604 = scmp.lt.s32.totalorder %s603, 1
          %s605 = scalar_select %p604, %s603, 1
          %s606 = sadd.s32 %s605, 2
          %s607 = smul.u32 2, %s606
          %s609 = ssub.s32 512, 512
          %610 = vsyncadd %s599, %s609
          %s611 = smul.addr %s607, 128
          %s612 = scalar_lea.hbm %s2, %s611
          %s614 = sshll.u32 1, 14
          %s615 = sxor.u32 4294967295, %s614
          %s617 = sld [smem:[#allocation0]]
          %s618 = sadd.s32 2, %s617
          %s620 = sshll.u32 7, 26
          %s621 = sxor.u32 4294967295, %s620
          %s622 = sand.u32 0, %s621
          %s623 = sshll.u32 %s618, 26
          %s624 = sor.u32 %s622, %s623
          %s625 = sshll.u32 %s602, 4
          %s626 = int_to_ptr.vmem [resolvable:$true] %s625
          %632 = sst [smem:[#allocation28]] 2560
          %s633 = scalar_lea.smem [#allocation28], 1
          %634 = sst [smem:[%s633]] 256
          %s635 = scalar_lea.smem [#allocation28], 2
          %636 = sst [smem:[%s635]] 2
          %s637 = scalar_lea.smem [#allocation28], 3
          %638 = sst [smem:[%s637]] 128
          %s639 = scalar_lea.smem [#allocation28], 4
          %640 = sst [smem:[%s639]] 128
          %s641 = scalar_lea.smem [#allocation28], 5
          %642 = sst [smem:[%s641]] 8
          %644 = dma.general %s612, 512, %s626, %s599, 131072, [#allocation28], %s624, 0
        $region28: #{tpu_custom_call.1} parent=15 // pred_fallthru
          _
        // Predicated region
        $region29: #{tpu_custom_call.1} parent=15 // pred_check
          %p645 = pneg %p180
        $region30: #{tpu_custom_call.1} parent=15 // pred_check_branch
          %647 = sbr.rel (%p645) target = $region32
        $region31: #{tpu_custom_call.1} parent=15 // pred_region
          #allocation30 [shape = 'u32[6]{0}', space=smem, size = 0x18, scoped, tag = 'DMA stride descriptor']
          %s648 = sand.u32 %s42, 1
          %s649 = scalar_lea.sflag [#allocation9], %s648
          %s650 = sand.u32 %s170, 1
          %s651 = smul.addr %s650, 32
          %s652 = scalar_lea.vmem [#allocation8], %s651
          %s653 = sadd.s32 %s49, %s50
          %p654 = scmp.lt.s32.totalorder %s653, 1
          %s655 = scalar_select %p654, %s653, 1
          %s656 = sadd.s32 %s655, 4
          %s657 = smul.u32 2, %s656
          %s659 = ssub.s32 512, 512
          %660 = vsyncadd %s649, %s659
          %s661 = smul.addr %s657, 128
          %s662 = scalar_lea.hbm %s3, %s661
          %s664 = sshll.u32 1, 14
          %s665 = sxor.u32 4294967295, %s664
          %s667 = sld [smem:[#allocation0]]
          %s668 = sadd.s32 2, %s667
          %s670 = sshll.u32 7, 26
          %s671 = sxor.u32 4294967295, %s670
          %s672 = sand.u32 0, %s671
          %s673 = sshll.u32 %s668, 26
          %s674 = sor.u32 %s672, %s673
          %s675 = sshll.u32 %s652, 4
          %s676 = int_to_ptr.vmem [resolvable:$true] %s675
          %682 = sst [smem:[#allocation30]] 2560
          %s683 = scalar_lea.smem [#allocation30], 1
          %684 = sst [smem:[%s683]] 256
          %s685 = scalar_lea.smem [#allocation30], 2
          %686 = sst [smem:[%s685]] 2
          %s687 = scalar_lea.smem [#allocation30], 3
          %688 = sst [smem:[%s687]] 128
          %s689 = scalar_lea.smem [#allocation30], 4
          %690 = sst [smem:[%s689]] 128
          %s691 = scalar_lea.smem [#allocation30], 5
          %692 = sst [smem:[%s691]] 8
          %694 = dma.general %s662, 512, %s676, %s649, 131072, [#allocation30], %s674, 0
        $region32: #{tpu_custom_call.1} parent=15 // pred_fallthru
          _
        // Predicated region
        $region33: #{tpu_custom_call.1} parent=15 // pred_check
          %p695 = pneg %p214
        $region34: #{tpu_custom_call.1} parent=15 // pred_check_branch
          %697 = sbr.rel (%p695) target = $region36
        $region35: #{tpu_custom_call.1} parent=15 // pred_region
          #allocation32 [shape = 'u32[6]{0}', space=smem, size = 0x18, scoped, tag = 'DMA stride descriptor']
          %s698 = sand.u32 %s42, 1
          %s699 = scalar_lea.sflag [#allocation9], %s698
          %s700 = sand.u32 %s204, 1
          %s701 = smul.addr %s700, 32
          %s702 = scalar_lea.vmem [#allocation10], %s701
          %s703 = sadd.s32 %s49, %s50
          %p704 = scmp.lt.s32.totalorder %s703, 1
          %s705 = scalar_select %p704, %s703, 1
          %s706 = sadd.s32 %s705, 6
          %s707 = smul.u32 2, %s706
          %s709 = ssub.s32 512, 512
          %710 = vsyncadd %s699, %s709
          %s711 = smul.addr %s707, 128
          %s712 = scalar_lea.hbm %s4, %s711
          %s714 = sshll.u32 1, 14
          %s715 = sxor.u32 4294967295, %s714
          %s717 = sld [smem:[#allocation0]]
          %s718 = sadd.s32 2, %s717
          %s720 = sshll.u32 7, 26
          %s721 = sxor.u32 4294967295, %s720
          %s722 = sand.u32 0, %s721
          %s723 = sshll.u32 %s718, 26
          %s724 = sor.u32 %s722, %s723
          %s725 = sshll.u32 %s702, 4
          %s726 = int_to_ptr.vmem [resolvable:$true] %s725
          %732 = sst [smem:[#allocation32]] 2560
          %s733 = scalar_lea.smem [#allocation32], 1
          %734 = sst [smem:[%s733]] 256
          %s735 = scalar_lea.smem [#allocation32], 2
          %736 = sst [smem:[%s735]] 2
          %s737 = scalar_lea.smem [#allocation32], 3
          %738 = sst [smem:[%s737]] 128
          %s739 = scalar_lea.smem [#allocation32], 4
          %740 = sst [smem:[%s739]] 128
          %s741 = scalar_lea.smem [#allocation32], 5
          %742 = sst [smem:[%s741]] 8
          %744 = dma.general %s712, 512, %s726, %s699, 131072, [#allocation32], %s724, 0
        $region36: #{tpu_custom_call.1} parent=15 // pred_fallthru
          _
        // Predicated region
        $region37: #{tpu_custom_call.1} parent=15 // pred_check
          %p745 = pneg %p248
        $region38: #{tpu_custom_call.1} parent=15 // pred_check_branch
          %747 = sbr.rel (%p745) target = $region40
        $region39: #{tpu_custom_call.1} parent=15 // pred_region
          #allocation34 [shape = 'u32[6]{0}', space=smem, size = 0x18, scoped, tag = 'DMA stride descriptor']
          %s748 = sand.u32 %s42, 1
          %s749 = scalar_lea.sflag [#allocation12], %s748
          %s750 = sand.u32 %s238, 1
          %s751 = smul.addr %s750, 32
          %s752 = scalar_lea.vmem [#allocation11], %s751
          %s753 = sadd.s32 %s49, %s50
          %p754 = scmp.lt.s32.totalorder %s753, 1
          %s755 = scalar_select %p754, %s753, 1
          %s756 = sadd.s32 %s755, 8
          %s757 = smul.u32 2, %s756
          %s759 = ssub.s32 512, 512
          %760 = vsyncadd %s749, %s759
          %s761 = smul.addr %s757, 128
          %s762 = scalar_lea.hbm %s5, %s761
          %s764 = sshll.u32 1, 14
          %s765 = sxor.u32 4294967295, %s764
          %s767 = sld [smem:[#allocation0]]
          %s768 = sadd.s32 2, %s767
          %s770 = sshll.u32 7, 26
          %s771 = sxor.u32 4294967295, %s770
          %s772 = sand.u32 0, %s771
          %s773 = sshll.u32 %s768, 26
          %s774 = sor.u32 %s772, %s773
          %s775 = sshll.u32 %s752, 4
          %s776 = int_to_ptr.vmem [resolvable:$true] %s775
          %782 = sst [smem:[#allocation34]] 2560
          %s783 = scalar_lea.smem [#allocation34], 1
          %784 = sst [smem:[%s783]] 256
          %s785 = scalar_lea.smem [#allocation34], 2
          %786 = sst [smem:[%s785]] 2
          %s787 = scalar_lea.smem [#allocation34], 3
          %788 = sst [smem:[%s787]] 128
          %s789 = scalar_lea.smem [#allocation34], 4
          %790 = sst [smem:[%s789]] 128
          %s791 = scalar_lea.smem [#allocation34], 5
          %792 = sst [smem:[%s791]] 8
          %794 = dma.general %s762, 512, %s776, %s749, 131072, [#allocation34], %s774, 0
        $region40: #{tpu_custom_call.1} parent=15 // pred_fallthru
          _
        // Predicated region
        $region41: #{tpu_custom_call.1} parent=15 // pred_check
          %p795 = pneg %p280
        $region42: #{tpu_custom_call.1} parent=15 // pred_check_branch
          %797 = sbr.rel (%p795) target = $region44
        $region43: #{tpu_custom_call.1} parent=15 // pred_region
          #allocation36 [shape = 'u32[6]{0}', space=smem, size = 0x18, scoped, tag = 'DMA stride descriptor']
          %s798 = sand.u32 %s42, 1
          %s799 = scalar_lea.sflag [#allocation12], %s798
          %s800 = sand.u32 %s270, 1
          %s801 = smul.addr %s800, 32
          %s802 = scalar_lea.vmem [#allocation13], %s801
          %s803 = sadd.s32 %s49, %s50
          %p804 = scmp.lt.s32.totalorder %s803, 1
          %s805 = scalar_select %p804, %s803, 1
          %s806 = smul.u32 2, %s805
          %s808 = ssub.s32 512, 512
          %809 = vsyncadd %s799, %s808
          %s810 = smul.addr %s806, 128
          %s811 = scalar_lea.hbm %s6, %s810
          %s813 = sshll.u32 1, 14
          %s814 = sxor.u32 4294967295, %s813
          %s816 = sld [smem:[#allocation0]]
          %s817 = sadd.s32 2, %s816
          %s819 = sshll.u32 7, 26
          %s820 = sxor.u32 4294967295, %s819
          %s821 = sand.u32 0, %s820
          %s822 = sshll.u32 %s817, 26
          %s823 = sor.u32 %s821, %s822
          %s824 = sshll.u32 %s802, 4
          %s825 = int_to_ptr.vmem [resolvable:$true] %s824
          %831 = sst [smem:[#allocation36]] 1024
          %s832 = scalar_lea.smem [#allocation36], 1
          %833 = sst [smem:[%s832]] 256
          %s834 = scalar_lea.smem [#allocation36], 2
          %835 = sst [smem:[%s834]] 2
          %s836 = scalar_lea.smem [#allocation36], 3
          %837 = sst [smem:[%s836]] 128
          %s838 = scalar_lea.smem [#allocation36], 4
          %839 = sst [smem:[%s838]] 128
          %s840 = scalar_lea.smem [#allocation36], 5
          %841 = sst [smem:[%s840]] 8
          %843 = dma.general %s811, 512, %s825, %s799, 131072, [#allocation36], %s823, 0
        $region44: #{tpu_custom_call.1} parent=15 // pred_fallthru
          _
        // Predicated region
        $region45: #{tpu_custom_call.1} parent=15 // pred_check
          %p844 = pneg %p314
        $region46: #{tpu_custom_call.1} parent=15 // pred_check_branch
          %846 = sbr.rel (%p844) target = $region48
        $region47: #{tpu_custom_call.1} parent=15 // pred_region
          #allocation38 [shape = 'u32[6]{0}', space=smem, size = 0x18, scoped, tag = 'DMA stride descriptor']
          %s847 = sand.u32 %s42, 1
          %s848 = scalar_lea.sflag [#allocation15], %s847
          %s849 = sand.u32 %s304, 1
          %s850 = smul.addr %s849, 32
          %s851 = scalar_lea.vmem [#allocation14], %s850
          %s852 = sadd.s32 %s49, %s50
          %p853 = scmp.lt.s32.totalorder %s852, 1
          %s854 = scalar_select %p853, %s852, 1
          %s855 = sadd.s32 %s854, 2
          %s856 = smul.u32 2, %s855
          %s858 = ssub.s32 512, 512
          %859 = vsyncadd %s848, %s858
          %s860 = smul.addr %s856, 128
          %s861 = scalar_lea.hbm %s7, %s860
          %s863 = sshll.u32 1, 14
          %s864 = sxor.u32 4294967295, %s863
          %s866 = sld [smem:[#allocation0]]
          %s867 = sadd.s32 2, %s866
          %s869 = sshll.u32 7, 26
          %s870 = sxor.u32 4294967295, %s869
          %s871 = sand.u32 0, %s870
          %s872 = sshll.u32 %s867, 26
          %s873 = sor.u32 %s871, %s872
          %s874 = sshll.u32 %s851, 4
          %s875 = int_to_ptr.vmem [resolvable:$true] %s874
          %881 = sst [smem:[#allocation38]] 1024
          %s882 = scalar_lea.smem [#allocation38], 1
          %883 = sst [smem:[%s882]] 256
          %s884 = scalar_lea.smem [#allocation38], 2
          %885 = sst [smem:[%s884]] 2
          %s886 = scalar_lea.smem [#allocation38], 3
          %887 = sst [smem:[%s886]] 128
          %s888 = scalar_lea.smem [#allocation38], 4
          %889 = sst [smem:[%s888]] 128
          %s890 = scalar_lea.smem [#allocation38], 5
          %891 = sst [smem:[%s890]] 8
          %893 = dma.general %s861, 512, %s875, %s848, 131072, [#allocation38], %s873, 0
        $region48: #{tpu_custom_call.1} parent=15 // pred_fallthru
          _
        // Predicated region
        $region49: #{tpu_custom_call.1} parent=15 // pred_check
          %p894 = pneg %p346
        $region50: #{tpu_custom_call.1} parent=15 // pred_check_branch
          %896 = sbr.rel (%p894) target = $region52
        $region51: #{tpu_custom_call.1} parent=15 // pred_region
          #allocation40 [shape = 'u32[6]{0}', space=smem, size = 0x18, scoped, tag = 'DMA stride descriptor']
          %s897 = sand.u32 %s42, 1
          %s898 = scalar_lea.sflag [#allocation15], %s897
          %s899 = sand.u32 %s336, 1
          %s900 = smul.addr %s899, 32
          %s901 = scalar_lea.vmem [#allocation16], %s900
          %s902 = sadd.s32 %s49, %s50
          %p903 = scmp.lt.s32.totalorder %s902, 1
          %s904 = scalar_select %p903, %s902, 1
          %s905 = smul.u32 2, %s904
          %s907 = ssub.s32 512, 512
          %908 = vsyncadd %s898, %s907
          %s909 = smul.addr %s905, 128
          %s910 = scalar_lea.hbm %s8, %s909
          %s912 = sshll.u32 1, 14
          %s913 = sxor.u32 4294967295, %s912
          %s915 = sld [smem:[#allocation0]]
          %s916 = sadd.s32 2, %s915
          %s918 = sshll.u32 7, 26
          %s919 = sxor.u32 4294967295, %s918
          %s920 = sand.u32 0, %s919
          %s921 = sshll.u32 %s916, 26
          %s922 = sor.u32 %s920, %s921
          %s923 = sshll.u32 %s901, 4
          %s924 = int_to_ptr.vmem [resolvable:$true] %s923
          %930 = sst [smem:[#allocation40]] 1024
          %s931 = scalar_lea.smem [#allocation40], 1
          %932 = sst [smem:[%s931]] 256
          %s933 = scalar_lea.smem [#allocation40], 2
          %934 = sst [smem:[%s933]] 2
          %s935 = scalar_lea.smem [#allocation40], 3
          %936 = sst [smem:[%s935]] 128
          %s937 = scalar_lea.smem [#allocation40], 4
          %938 = sst [smem:[%s937]] 128
          %s939 = scalar_lea.smem [#allocation40], 5
          %940 = sst [smem:[%s939]] 8
          %942 = dma.general %s910, 512, %s924, %s898, 131072, [#allocation40], %s922, 0
        $region52: #{tpu_custom_call.1} parent=15 // pred_fallthru
          _
        // Predicated region
        $region53: #{tpu_custom_call.1} parent=15 // pred_check
          %p943 = pneg %p380
        $region54: #{tpu_custom_call.1} parent=15 // pred_check_branch
          %945 = sbr.rel (%p943) target = $region56
        $region55: #{tpu_custom_call.1} parent=15 // pred_region
          #allocation42 [shape = 'u32[6]{0}', space=smem, size = 0x18, scoped, tag = 'DMA stride descriptor']
          %s946 = sand.u32 %s42, 1
          %s947 = scalar_lea.sflag [#allocation18], %s946
          %s948 = sand.u32 %s370, 1
          %s949 = smul.addr %s948, 32
          %s950 = scalar_lea.vmem [#allocation17], %s949
          %s951 = sadd.s32 %s49, %s50
          %p952 = scmp.lt.s32.totalorder %s951, 1
          %s953 = scalar_select %p952, %s951, 1
          %s954 = sadd.s32 %s953, 2
          %s955 = smul.u32 2, %s954
          %s957 = ssub.s32 512, 512
          %958 = vsyncadd %s947, %s957
          %s959 = smul.addr %s955, 128
          %s960 = scalar_lea.hbm %s9, %s959
          %s962 = sshll.u32 1, 14
          %s963 = sxor.u32 4294967295, %s962
          %s965 = sld [smem:[#allocation0]]
          %s966 = sadd.s32 2, %s965
          %s968 = sshll.u32 7, 26
          %s969 = sxor.u32 4294967295, %s968
          %s970 = sand.u32 0, %s969
          %s971 = sshll.u32 %s966, 26
          %s972 = sor.u32 %s970, %s971
          %s973 = sshll.u32 %s950, 4
          %s974 = int_to_ptr.vmem [resolvable:$true] %s973
          %980 = sst [smem:[#allocation42]] 1024
          %s981 = scalar_lea.smem [#allocation42], 1
          %982 = sst [smem:[%s981]] 256
          %s983 = scalar_lea.smem [#allocation42], 2
          %984 = sst [smem:[%s983]] 2
          %s985 = scalar_lea.smem [#allocation42], 3
          %986 = sst [smem:[%s985]] 128
          %s987 = scalar_lea.smem [#allocation42], 4
          %988 = sst [smem:[%s987]] 128
          %s989 = scalar_lea.smem [#allocation42], 5
          %990 = sst [smem:[%s989]] 8
          %992 = dma.general %s960, 512, %s974, %s947, 131072, [#allocation42], %s972, 0
        $region56: #{tpu_custom_call.1} parent=15 // pred_fallthru
          _
        // Predicated region
        $region57: #{tpu_custom_call.1} parent=15 // pred_check
          %p993 = pneg %p412
        $region58: #{tpu_custom_call.1} parent=15 // pred_check_branch
          %995 = sbr.rel (%p993) target = $region60
        $region59: #{tpu_custom_call.1} parent=15 // pred_region
          #allocation44 [shape = 'u32[6]{0}', space=smem, size = 0x18, scoped, tag = 'DMA stride descriptor']
          %s996 = sand.u32 %s42, 1
          %s997 = scalar_lea.sflag [#allocation18], %s996
          %s998 = sand.u32 %s402, 1
          %s999 = smul.addr %s998, 32
          %s1000 = scalar_lea.vmem [#allocation19], %s999
          %s1001 = sadd.s32 %s49, %s50
          %p1002 = scmp.lt.s32.totalorder %s1001, 1
          %s1003 = scalar_select %p1002, %s1001, 1
          %s1004 = smul.u32 2, %s1003
          %s1006 = ssub.s32 512, 512
          %1007 = vsyncadd %s997, %s1006
          %s1008 = smul.addr %s1004, 128
          %s1009 = scalar_lea.hbm %s10, %s1008
          %s1011 = sshll.u32 1, 14
          %s1012 = sxor.u32 4294967295, %s1011
          %s1014 = sld [smem:[#allocation0]]
          %s1015 = sadd.s32 2, %s1014
          %s1017 = sshll.u32 7, 26
          %s1018 = sxor.u32 4294967295, %s1017
          %s1019 = sand.u32 0, %s1018
          %s1020 = sshll.u32 %s1015, 26
          %s1021 = sor.u32 %s1019, %s1020
          %s1022 = sshll.u32 %s1000, 4
          %s1023 = int_to_ptr.vmem [resolvable:$true] %s1022
          %1029 = sst [smem:[#allocation44]] 1024
          %s1030 = scalar_lea.smem [#allocation44], 1
          %1031 = sst [smem:[%s1030]] 256
          %s1032 = scalar_lea.smem [#allocation44], 2
          %1033 = sst [smem:[%s1032]] 2
          %s1034 = scalar_lea.smem [#allocation44], 3
          %1035 = sst [smem:[%s1034]] 128
          %s1036 = scalar_lea.smem [#allocation44], 4
          %1037 = sst [smem:[%s1036]] 128
          %s1038 = scalar_lea.smem [#allocation44], 5
          %1039 = sst [smem:[%s1038]] 8
          %1041 = dma.general %s1009, 512, %s1023, %s997, 131072, [#allocation44], %s1021, 0
        $region60: #{tpu_custom_call.1} parent=15 // pred_fallthru
          _
        // Predicated region
        $region61: #{tpu_custom_call.1} parent=15 // pred_check
          %p1042 = pneg %p446
        $region62: #{tpu_custom_call.1} parent=15 // pred_check_branch
          %1044 = sbr.rel (%p1042) target = $region64
        $region63: #{tpu_custom_call.1} parent=15 // pred_region
          #allocation46 [shape = 'u32[6]{0}', space=smem, size = 0x18, scoped, tag = 'DMA stride descriptor']
          %s1045 = sand.u32 %s436, 1
          %s1046 = scalar_lea.sflag [#allocation21], %s1045
          %s1047 = sand.u32 %s436, 1
          %s1048 = smul.addr %s1047, 32
          %s1049 = scalar_lea.vmem [#allocation20], %s1048
          %s1050 = sadd.s32 %s49, %s50
          %p1051 = scmp.lt.s32.totalorder %s1050, 1
          %s1052 = scalar_select %p1051, %s1050, 1
          %s1053 = sadd.s32 %s1052, 2
          %s1054 = smul.u32 2, %s1053
          %s1056 = ssub.s32 512, 512
          %1057 = vsyncadd %s1046, %s1056
          %s1058 = smul.addr %s1054, 128
          %s1059 = scalar_lea.hbm %s11, %s1058
          %s1061 = sshll.u32 1, 14
          %s1062 = sxor.u32 4294967295, %s1061
          %s1064 = sld [smem:[#allocation0]]
          %s1065 = sadd.s32 2, %s1064
          %s1067 = sshll.u32 7, 26
          %s1068 = sxor.u32 4294967295, %s1067
          %s1069 = sand.u32 0, %s1068
          %s1070 = sshll.u32 %s1065, 26
          %s1071 = sor.u32 %s1069, %s1070
          %s1072 = sshll.u32 %s1049, 4
          %s1073 = int_to_ptr.vmem [resolvable:$true] %s1072
          %1079 = sst [smem:[#allocation46]] 1024
          %s1080 = scalar_lea.smem [#allocation46], 1
          %1081 = sst [smem:[%s1080]] 256
          %s1082 = scalar_lea.smem [#allocation46], 2
          %1083 = sst [smem:[%s1082]] 2
          %s1084 = scalar_lea.smem [#allocation46], 3
          %1085 = sst [smem:[%s1084]] 128
          %s1086 = scalar_lea.smem [#allocation46], 4
          %1087 = sst [smem:[%s1086]] 128
          %s1088 = scalar_lea.smem [#allocation46], 5
          %1089 = sst [smem:[%s1088]] 8
          %1091 = dma.general %s1059, 512, %s1073, %s1046, 131072, [#allocation46], %s1071, 0
        $region64: #{tpu_custom_call.1} parent=15 // pred_fallthru
          _
      $region16: #{tpu_custom_call.1} parent=5 // pred_fallthru
        _
      %p1092 = scmp.le.s32.totalorder 1, %s42
      %p1093 = scmp.lt.s32.totalorder %s42, 3
      %p1094 = pnand %p1092, %p1093
      %p1095 = pneg %p1094
      // Predicated region
      $region65: #{tpu_custom_call.1} parent=5 // pred_check
        _
      $region66: #{tpu_custom_call.1} parent=5 // pred_check_branch
        %1097 = sbr.rel (%p1094) target = $region68
      $region67: #{tpu_custom_call.1} parent=5 // pred_region
        %s1098 = ssub.s32 %s42, 1
        %s1099 = sand.u32 %s73, 1
        %s1100 = scalar_lea.sflag [#allocation3], %s1099
        %s1101 = sand.u32 %s73, 1
        %s1102 = smul.addr %s1101, 32
        %s1103 = scalar_lea.vmem [#allocation2], %s1102
        // Predicated region
        $region69: #{tpu_custom_call.1} parent=67 // pred_check
          %p1104 = pneg %p86
        $region70: #{tpu_custom_call.1} parent=67 // pred_check_branch
          %1106 = sbr.rel (%p1104) target = $region72
        $region71: #{tpu_custom_call.1} parent=67 // pred_region
          %1107 = dma.done %s1100, 512
        $region72: #{tpu_custom_call.1} parent=67 // pred_fallthru
          _
        %s1108 = sand.u32 %s47, 1
        %s1109 = scalar_lea.sflag [#allocation6], %s1108
        %s1110 = sand.u32 %s105, 1
        %s1111 = smul.addr %s1110, 32
        %s1112 = scalar_lea.vmem [#allocation5], %s1111
        // Predicated region
        $region73: #{tpu_custom_call.1} parent=67 // pred_check
          %p1113 = pneg %p118
        $region74: #{tpu_custom_call.1} parent=67 // pred_check_branch
          %1115 = sbr.rel (%p1113) target = $region76
        $region75: #{tpu_custom_call.1} parent=67 // pred_region
          %1116 = dma.done %s1109, 512
        $region76: #{tpu_custom_call.1} parent=67 // pred_fallthru
          _
        %s1117 = sand.u32 %s47, 1
        %s1118 = scalar_lea.sflag [#allocation6], %s1117
        %s1119 = sand.u32 %s139, 1
        %s1120 = smul.addr %s1119, 32
        %s1121 = scalar_lea.vmem [#allocation7], %s1120
        // Predicated region
        $region77: #{tpu_custom_call.1} parent=67 // pred_check
          %p1122 = pneg %p152
        $region78: #{tpu_custom_call.1} parent=67 // pred_check_branch
          %1124 = sbr.rel (%p1122) target = $region80
        $region79: #{tpu_custom_call.1} parent=67 // pred_region
          %1125 = dma.done %s1118, 512
        $region80: #{tpu_custom_call.1} parent=67 // pred_fallthru
          _
        %s1126 = sand.u32 %s47, 1
        %s1127 = scalar_lea.sflag [#allocation9], %s1126
        %s1128 = sand.u32 %s173, 1
        %s1129 = smul.addr %s1128, 32
        %s1130 = scalar_lea.vmem [#allocation8], %s1129
        // Predicated region
        $region81: #{tpu_custom_call.1} parent=67 // pred_check
          %p1131 = pneg %p186
        $region82: #{tpu_custom_call.1} parent=67 // pred_check_branch
          %1133 = sbr.rel (%p1131) target = $region84
        $region83: #{tpu_custom_call.1} parent=67 // pred_region
          %1134 = dma.done %s1127, 512
        $region84: #{tpu_custom_call.1} parent=67 // pred_fallthru
          _
        %s1135 = sand.u32 %s47, 1
        %s1136 = scalar_lea.sflag [#allocation9], %s1135
        %s1137 = sand.u32 %s207, 1
        %s1138 = smul.addr %s1137, 32
        %s1139 = scalar_lea.vmem [#allocation10], %s1138
        // Predicated region
        $region85: #{tpu_custom_call.1} parent=67 // pred_check
          %p1140 = pneg %p220
        $region86: #{tpu_custom_call.1} parent=67 // pred_check_branch
          %1142 = sbr.rel (%p1140) target = $region88
        $region87: #{tpu_custom_call.1} parent=67 // pred_region
          %1143 = dma.done %s1136, 512
        $region88: #{tpu_custom_call.1} parent=67 // pred_fallthru
          _
        %s1144 = sand.u32 %s47, 1
        %s1145 = scalar_lea.sflag [#allocation12], %s1144
        %s1146 = sand.u32 %s241, 1
        %s1147 = smul.addr %s1146, 32
        %s1148 = scalar_lea.vmem [#allocation11], %s1147
        // Predicated region
        $region89: #{tpu_custom_call.1} parent=67 // pred_check
          %p1149 = pneg %p254
        $region90: #{tpu_custom_call.1} parent=67 // pred_check_branch
          %1151 = sbr.rel (%p1149) target = $region92
        $region91: #{tpu_custom_call.1} parent=67 // pred_region
          %1152 = dma.done %s1145, 512
        $region92: #{tpu_custom_call.1} parent=67 // pred_fallthru
          _
        %s1153 = sand.u32 %s47, 1
        %s1154 = scalar_lea.sflag [#allocation12], %s1153
        %s1155 = sand.u32 %s273, 1
        %s1156 = smul.addr %s1155, 32
        %s1157 = scalar_lea.vmem [#allocation13], %s1156
        // Predicated region
        $region93: #{tpu_custom_call.1} parent=67 // pred_check
          %p1158 = pneg %p286
        $region94: #{tpu_custom_call.1} parent=67 // pred_check_branch
          %1160 = sbr.rel (%p1158) target = $region96
        $region95: #{tpu_custom_call.1} parent=67 // pred_region
          %1161 = dma.done %s1154, 512
        $region96: #{tpu_custom_call.1} parent=67 // pred_fallthru
          _
        %s1162 = sand.u32 %s47, 1
        %s1163 = scalar_lea.sflag [#allocation15], %s1162
        %s1164 = sand.u32 %s307, 1
        %s1165 = smul.addr %s1164, 32
        %s1166 = scalar_lea.vmem [#allocation14], %s1165
        // Predicated region
        $region97: #{tpu_custom_call.1} parent=67 // pred_check
          %p1167 = pneg %p320
        $region98: #{tpu_custom_call.1} parent=67 // pred_check_branch
          %1169 = sbr.rel (%p1167) target = $region100
        $region99: #{tpu_custom_call.1} parent=67 // pred_region
          %1170 = dma.done %s1163, 512
        $region100: #{tpu_custom_call.1} parent=67 // pred_fallthru
          _
        %s1171 = sand.u32 %s47, 1
        %s1172 = scalar_lea.sflag [#allocation15], %s1171
        %s1173 = sand.u32 %s339, 1
        %s1174 = smul.addr %s1173, 32
        %s1175 = scalar_lea.vmem [#allocation16], %s1174
        // Predicated region
        $region101: #{tpu_custom_call.1} parent=67 // pred_check
          %p1176 = pneg %p352
        $region102: #{tpu_custom_call.1} parent=67 // pred_check_branch
          %1178 = sbr.rel (%p1176) target = $region104
        $region103: #{tpu_custom_call.1} parent=67 // pred_region
          %1179 = dma.done %s1172, 512
        $region104: #{tpu_custom_call.1} parent=67 // pred_fallthru
          _
        %s1180 = sand.u32 %s47, 1
        %s1181 = scalar_lea.sflag [#allocation18], %s1180
        %s1182 = sand.u32 %s373, 1
        %s1183 = smul.addr %s1182, 32
        %s1184 = scalar_lea.vmem [#allocation17], %s1183
        // Predicated region
        $region105: #{tpu_custom_call.1} parent=67 // pred_check
          %p1185 = pneg %p386
        $region106: #{tpu_custom_call.1} parent=67 // pred_check_branch
          %1187 = sbr.rel (%p1185) target = $region108
        $region107: #{tpu_custom_call.1} parent=67 // pred_region
          %1188 = dma.done %s1181, 512
        $region108: #{tpu_custom_call.1} parent=67 // pred_fallthru
          _
        %s1189 = sand.u32 %s47, 1
        %s1190 = scalar_lea.sflag [#allocation18], %s1189
        %s1191 = sand.u32 %s405, 1
        %s1192 = smul.addr %s1191, 32
        %s1193 = scalar_lea.vmem [#allocation19], %s1192
        // Predicated region
        $region109: #{tpu_custom_call.1} parent=67 // pred_check
          %p1194 = pneg %p418
        $region110: #{tpu_custom_call.1} parent=67 // pred_check_branch
          %1196 = sbr.rel (%p1194) target = $region112
        $region111: #{tpu_custom_call.1} parent=67 // pred_region
          %1197 = dma.done %s1190, 512
        $region112: #{tpu_custom_call.1} parent=67 // pred_fallthru
          _
        %s1198 = sand.u32 %s439, 1
        %s1199 = scalar_lea.sflag [#allocation21], %s1198
        %s1200 = sand.u32 %s439, 1
        %s1201 = smul.addr %s1200, 32
        %s1202 = scalar_lea.vmem [#allocation20], %s1201
        // Predicated region
        $region113: #{tpu_custom_call.1} parent=67 // pred_check
          %p1203 = pneg %p452
        $region114: #{tpu_custom_call.1} parent=67 // pred_check_branch
          %1205 = sbr.rel (%p1203) target = $region116
        $region115: #{tpu_custom_call.1} parent=67 // pred_region
          %1206 = dma.done %s1199, 512
        $region116: #{tpu_custom_call.1} parent=67 // pred_fallthru
          _
        %s1207 = sand.u32 %s73, 1
        %s1208 = scalar_lea.sflag [#allocation3], %s1207
        %s1209 = sand.u32 %s73, 1
        %s1210 = smul.addr %s1209, 32
        %s1211 = scalar_lea.vmem [#allocation2], %s1210
        %p1212 = pneg %p86
        %p1213 = pneg %p83
        %s1214 = sand.u32 %s47, 1
        %s1215 = scalar_lea.sflag [#allocation6], %s1214
        %s1216 = sand.u32 %s105, 1
        %s1217 = smul.addr %s1216, 32
        %s1218 = scalar_lea.vmem [#allocation5], %s1217
        %p1219 = pneg %p118
        %p1220 = pneg %p115
        %s1221 = sand.u32 %s47, 1
        %s1222 = scalar_lea.sflag [#allocation6], %s1221
        %s1223 = sand.u32 %s139, 1
        %s1224 = smul.addr %s1223, 32
        %s1225 = scalar_lea.vmem [#allocation7], %s1224
        %p1226 = pneg %p152
        %p1227 = pneg %p149
        %s1228 = sand.u32 %s47, 1
        %s1229 = scalar_lea.sflag [#allocation9], %s1228
        %s1230 = sand.u32 %s173, 1
        %s1231 = smul.addr %s1230, 32
        %s1232 = scalar_lea.vmem [#allocation8], %s1231
        %p1233 = pneg %p186
        %p1234 = pneg %p183
        %s1235 = sand.u32 %s47, 1
        %s1236 = scalar_lea.sflag [#allocation9], %s1235
        %s1237 = sand.u32 %s207, 1
        %s1238 = smul.addr %s1237, 32
        %s1239 = scalar_lea.vmem [#allocation10], %s1238
        %p1240 = pneg %p220
        %p1241 = pneg %p217
        %s1242 = sand.u32 %s47, 1
        %s1243 = scalar_lea.sflag [#allocation12], %s1242
        %s1244 = sand.u32 %s241, 1
        %s1245 = smul.addr %s1244, 32
        %s1246 = scalar_lea.vmem [#allocation11], %s1245
        %p1247 = pneg %p254
        %p1248 = pneg %p251
        %s1249 = sand.u32 %s47, 1
        %s1250 = scalar_lea.sflag [#allocation12], %s1249
        %s1251 = sand.u32 %s273, 1
        %s1252 = smul.addr %s1251, 32
        %s1253 = scalar_lea.vmem [#allocation13], %s1252
        %p1254 = pneg %p286
        %p1255 = pneg %p283
        %s1256 = sand.u32 %s47, 1
        %s1257 = scalar_lea.sflag [#allocation15], %s1256
        %s1258 = sand.u32 %s307, 1
        %s1259 = smul.addr %s1258, 32
        %s1260 = scalar_lea.vmem [#allocation14], %s1259
        %p1261 = pneg %p320
        %p1262 = pneg %p317
        %s1263 = sand.u32 %s47, 1
        %s1264 = scalar_lea.sflag [#allocation15], %s1263
        %s1265 = sand.u32 %s339, 1
        %s1266 = smul.addr %s1265, 32
        %s1267 = scalar_lea.vmem [#allocation16], %s1266
        %p1268 = pneg %p352
        %p1269 = pneg %p349
        %s1270 = sand.u32 %s47, 1
        %s1271 = scalar_lea.sflag [#allocation18], %s1270
        %s1272 = sand.u32 %s373, 1
        %s1273 = smul.addr %s1272, 32
        %s1274 = scalar_lea.vmem [#allocation17], %s1273
        %p1275 = pneg %p386
        %p1276 = pneg %p383
        %s1277 = sand.u32 %s47, 1
        %s1278 = scalar_lea.sflag [#allocation18], %s1277
        %s1279 = sand.u32 %s405, 1
        %s1280 = smul.addr %s1279, 32
        %s1281 = scalar_lea.vmem [#allocation19], %s1280
        %p1282 = pneg %p418
        %p1283 = pneg %p415
        %s1284 = sand.u32 %s439, 1
        %s1285 = scalar_lea.sflag [#allocation21], %s1284
        %s1286 = sand.u32 %s439, 1
        %s1287 = smul.addr %s1286, 32
        %s1288 = scalar_lea.vmem [#allocation20], %s1287
        %p1289 = pneg %p452
        %p1290 = pneg %p449
        %p1291 = pneg %p478
        %p1292 = pneg %p475
        %s1293 = sand.u32 %s465, 1
        %s1294 = scalar_lea.sflag [#allocation4], %s1293
        %s1295 = sand.u32 %s465, 1
        %s1296 = smul.addr %s1295, 32
        %s1297 = scalar_lea.vmem [#allocation22], %s1296
        %s1298 = sadd.s32 %s51, %s52
        %p1299 = scmp.lt.s32.totalorder %s1298, 1
        %s1300 = scalar_select %p1299, %s1298, 1
        %s1301 = smul.u32 2, %s1300
        %s1302 = sadd.s32 %s51, %s52
        %p1303 = scmp.lt.s32.totalorder %s1302, 1
        %s1304 = scalar_select %p1303, %s1302, 1
        %s1305 = smul.u32 2, %s1304
        %s1306 = sadd.s32 %s51, %s52
        %p1307 = scmp.lt.s32.totalorder %s1306, 1
        %s1308 = scalar_select %p1307, %s1306, 1
        %s1309 = sadd.s32 %s1308, 2
        %s1310 = smul.u32 2, %s1309
        %s1311 = sadd.s32 %s51, %s52
        %p1312 = scmp.lt.s32.totalorder %s1311, 1
        %s1313 = scalar_select %p1312, %s1311, 1
        %s1314 = sadd.s32 %s1313, 4
        %s1315 = smul.u32 2, %s1314
        %s1316 = sadd.s32 %s51, %s52
        %p1317 = scmp.lt.s32.totalorder %s1316, 1
        %s1318 = scalar_select %p1317, %s1316, 1
        %s1319 = sadd.s32 %s1318, 6
        %s1320 = smul.u32 2, %s1319
        %s1321 = sadd.s32 %s51, %s52
        %p1322 = scmp.lt.s32.totalorder %s1321, 1
        %s1323 = scalar_select %p1322, %s1321, 1
        %s1324 = sadd.s32 %s1323, 8
        %s1325 = smul.u32 2, %s1324
        %s1326 = sadd.s32 %s51, %s52
        %p1327 = scmp.lt.s32.totalorder %s1326, 1
        %s1328 = scalar_select %p1327, %s1326, 1
        %s1329 = smul.u32 2, %s1328
        %s1330 = sadd.s32 %s51, %s52
        %p1331 = scmp.lt.s32.totalorder %s1330, 1
        %s1332 = scalar_select %p1331, %s1330, 1
        %s1333 = sadd.s32 %s1332, 2
        %s1334 = smul.u32 2, %s1333
        %s1335 = sadd.s32 %s51, %s52
        %p1336 = scmp.lt.s32.totalorder %s1335, 1
        %s1337 = scalar_select %p1336, %s1335, 1
        %s1338 = smul.u32 2, %s1337
        %s1339 = sadd.s32 %s51, %s52
        %p1340 = scmp.lt.s32.totalorder %s1339, 1
        %s1341 = scalar_select %p1340, %s1339, 1
        %s1342 = sadd.s32 %s1341, 2
        %s1343 = smul.u32 2, %s1342
        %s1344 = sadd.s32 %s51, %s52
        %p1345 = scmp.lt.s32.totalorder %s1344, 1
        %s1346 = scalar_select %p1345, %s1344, 1
        %s1347 = smul.u32 2, %s1346
        %s1348 = sadd.s32 %s51, %s52
        %p1349 = scmp.lt.s32.totalorder %s1348, 1
        %s1350 = scalar_select %p1349, %s1348, 1
        %s1351 = sadd.s32 %s1350, 2
        %s1352 = smul.u32 2, %s1351
        %s1353 = smul.u32 4, %s51
        %p1354 = scmp.eq.s32.totalorder %s52, 0
        // Predicated region
        $region117: #{tpu_custom_call.1} parent=67 // pred_check
          %p1355 = pneg %p1354
        $region118: #{tpu_custom_call.1} parent=67 // pred_check_branch
          %1357 = sbr.rel (%p1355) target = $region120
        $region119: #{tpu_custom_call.1} parent=67 // pred_region
          %1358 = vst [vmem:[%s1297] sm:$0xff] 0.0
          %1359 = vst [vmem:[%s1297 + $0x8] sm:$0xff] 0.0
          %1360 = vst [vmem:[%s1297 + $0x10] sm:$0xff] 0.0
          %1361 = vst [vmem:[%s1297 + $0x18] sm:$0xff] 0.0
        $region120: #{tpu_custom_call.1} parent=67 // pred_fallthru
          _
        %v1362 = vld [vmem:[%s1103] sm:$0xff]
        %v1363 = vld [vmem:[%s1103 + $0x8] sm:$0xff]
        %v1364 = vld [vmem:[%s1103 + $0x10] sm:$0xff]
        %v1365 = vld [vmem:[%s1103 + $0x18] sm:$0xff]
        %v1366 = vld [vmem:[%s1112] sm:$0xff]
        %v1367 = vld [vmem:[%s1112 + $0x8] sm:$0xff]
        %v1368 = vld [vmem:[%s1112 + $0x10] sm:$0xff]
        %v1369 = vld [vmem:[%s1112 + $0x18] sm:$0xff]
        %vm1370 = vcmp.eq.f32.partialorder %v1362, 1.0
        %vm1371 = vcmp.eq.f32.partialorder %v1363, 1.0
        %vm1372 = vcmp.eq.f32.partialorder %v1364, 1.0
        %vm1373 = vcmp.eq.f32.partialorder %v1365, 1.0
        %v1374 = vsub.f32 1.0, %v1362
        %v1375 = vsub.f32 1.0, %v1363
        %v1376 = vsub.f32 1.0, %v1364
        %v1377 = vsub.f32 1.0, %v1365
        %v1378 = vmul.f32 %v1374, %v1374
        %v1379 = vmul.f32 %v1375, %v1375
        %v1380 = vmul.f32 %v1376, %v1376
        %v1381 = vmul.f32 %v1377, %v1377
        %v1382 = vmul.f32 %v1378, %v1378
        %v1383 = vmul.f32 %v1379, %v1379
        %v1384 = vmul.f32 %v1380, %v1380
        %v1385 = vmul.f32 %v1381, %v1381
        %v1386 = vsub.f32 1.0, %v1366
        %v1387 = vsub.f32 1.0, %v1367
        %v1388 = vsub.f32 1.0, %v1368
        %v1389 = vsub.f32 1.0, %v1369
        %v1390 = vlog2.pop %v1366
        %v1391 = vmul.f32 %v1390, 0.6931472
        %v1392 = vlog2.pop %v1367
        %v1393 = vmul.f32 %v1392, 0.6931472
        %v1394 = vlog2.pop %v1368
        %v1395 = vmul.f32 %v1394, 0.6931472
        %v1396 = vlog2.pop %v1369
        %v1397 = vmul.f32 %v1396, 0.6931472
        %v1398 = vmul.f32 %v1386, %v1386
        %v1399 = vmul.f32 %v1387, %v1387
        %v1400 = vmul.f32 %v1388, %v1388
        %v1401 = vmul.f32 %v1389, %v1389
        %v1402 = vmul.f32 %v1391, %v1398
        %v1403 = vmul.f32 %v1393, %v1399
        %v1404 = vmul.f32 %v1395, %v1400
        %v1405 = vmul.f32 %v1397, %v1401
        %v1406 = vlog2.pop %v1386
        %v1407 = vmul.f32 %v1406, 0.6931472
        %v1408 = vlog2.pop %v1387
        %v1409 = vmul.f32 %v1408, 0.6931472
        %v1410 = vlog2.pop %v1388
        %v1411 = vmul.f32 %v1410, 0.6931472
        %v1412 = vlog2.pop %v1389
        %v1413 = vmul.f32 %v1412, 0.6931472
        %v1414 = vmul.f32 %v1366, %v1366
        %v1415 = vmul.f32 %v1367, %v1367
        %v1416 = vmul.f32 %v1368, %v1368
        %v1417 = vmul.f32 %v1369, %v1369
        %v1418 = vmul.f32 %v1407, %v1414
        %v1419 = vmul.f32 %v1409, %v1415
        %v1420 = vmul.f32 %v1411, %v1416
        %v1421 = vmul.f32 %v1413, %v1417
        %v1422 = vmul.f32 %v1418, %v1382
        %v1423 = vmul.f32 %v1419, %v1383
        %v1424 = vmul.f32 %v1420, %v1384
        %v1425 = vmul.f32 %v1421, %v1385
        %vm1426 = vcmp.lt.f32.partialorder %v1362, 1.0
        %vm1427 = vcmp.lt.f32.partialorder %v1363, 1.0
        %vm1428 = vcmp.lt.f32.partialorder %v1364, 1.0
        %vm1429 = vcmp.lt.f32.partialorder %v1365, 1.0
        %v1430 = vsel %vm1426, %v1422, 0.0
        %v1431 = vsel %vm1427, %v1423, 0.0
        %v1432 = vsel %vm1428, %v1424, 0.0
        %v1433 = vsel %vm1429, %v1425, 0.0
        %v1434 = vsel %vm1370, %v1402, %v1430
        %v1435 = vsel %vm1371, %v1403, %v1431
        %v1436 = vsel %vm1372, %v1404, %v1432
        %v1437 = vsel %vm1373, %v1405, %v1433
        %v1438 = vsel %vm1370, 1, 0
        %v1439 = vsel %vm1371, 1, 0
        %v1440 = vsel %vm1372, 1, 0
        %v1441 = vsel %vm1373, 1, 0
        %v1442 = vcvt.s32.f32 %v1438
        %v1443 = vcvt.s32.f32 %v1439
        %v1444 = vcvt.s32.f32 %v1440
        %v1445 = vcvt.s32.f32 %v1441
        %v1446 = vld [vmem:[%s1193] sm:$0xff]
        %v1447 = vld [vmem:[%s1193 + $0x8] sm:$0xff]
        %v1448 = vld [vmem:[%s1193 + $0x10] sm:$0xff]
        %v1449 = vld [vmem:[%s1193 + $0x18] sm:$0xff]
        %v1450 = vld [vmem:[%s1202] sm:$0xff]
        %v1451 = vld [vmem:[%s1202 + $0x8] sm:$0xff]
        %v1452 = vld [vmem:[%s1202 + $0x10] sm:$0xff]
        %v1453 = vld [vmem:[%s1202 + $0x18] sm:$0xff]
        %v1454 = vld [vmem:[%s1121] sm:$0xff]
        %v1455 = vld [vmem:[%s1121 + $0x8] sm:$0xff]
        %v1456 = vld [vmem:[%s1121 + $0x10] sm:$0xff]
        %v1457 = vld [vmem:[%s1121 + $0x18] sm:$0xff]
        %v1458 = vld [vmem:[%s1157] sm:$0xff]
        %v1459 = vld [vmem:[%s1157 + $0x8] sm:$0xff]
        %v1460 = vld [vmem:[%s1157 + $0x10] sm:$0xff]
        %v1461 = vld [vmem:[%s1157 + $0x18] sm:$0xff]
        %v1462 = vsub.f32 %v1454, %v1458
        %v1463 = vsub.f32 %v1455, %v1459
        %v1464 = vsub.f32 %v1456, %v1460
        %v1465 = vsub.f32 %v1457, %v1461
        %v1466 = vand.u32 2147483647, %v1462
        %v1467 = vand.u32 2147483647, %v1463
        %v1468 = vand.u32 2147483647, %v1464
        %v1469 = vand.u32 2147483647, %v1465
        %v1470 = vmul.f32 %v1466, %v1446
        %v1471 = vmul.f32 %v1467, %v1447
        %v1472 = vmul.f32 %v1468, %v1448
        %v1473 = vmul.f32 %v1469, %v1449
        %v1474 = vld [vmem:[%s1130] sm:$0xff]
        %v1475 = vld [vmem:[%s1130 + $0x8] sm:$0xff]
        %v1476 = vld [vmem:[%s1130 + $0x10] sm:$0xff]
        %v1477 = vld [vmem:[%s1130 + $0x18] sm:$0xff]
        %v1478 = vld [vmem:[%s1166] sm:$0xff]
        %v1479 = vld [vmem:[%s1166 + $0x8] sm:$0xff]
        %v1480 = vld [vmem:[%s1166 + $0x10] sm:$0xff]
        %v1481 = vld [vmem:[%s1166 + $0x18] sm:$0xff]
        %v1482 = vsub.f32 %v1474, %v1478
        %v1483 = vsub.f32 %v1475, %v1479
        %v1484 = vsub.f32 %v1476, %v1480
        %v1485 = vsub.f32 %v1477, %v1481
        %v1486 = vand.u32 2147483647, %v1482
        %v1487 = vand.u32 2147483647, %v1483
        %v1488 = vand.u32 2147483647, %v1484
        %v1489 = vand.u32 2147483647, %v1485
        %v1490 = vmul.f32 %v1486, %v1450
        %v1491 = vmul.f32 %v1487, %v1451
        %v1492 = vmul.f32 %v1488, %v1452
        %v1493 = vmul.f32 %v1489, %v1453
        %v1494 = vadd.f32 %v1470, %v1490
        %v1495 = vadd.f32 %v1471, %v1491
        %v1496 = vadd.f32 %v1472, %v1492
        %v1497 = vadd.f32 %v1473, %v1493
        %v1498 = vld [vmem:[%s1139] sm:$0xff]
        %v1499 = vld [vmem:[%s1139 + $0x8] sm:$0xff]
        %v1500 = vld [vmem:[%s1139 + $0x10] sm:$0xff]
        %v1501 = vld [vmem:[%s1139 + $0x18] sm:$0xff]
        %v1502 = vld [vmem:[%s1175] sm:$0xff]
        %v1503 = vld [vmem:[%s1175 + $0x8] sm:$0xff]
        %v1504 = vld [vmem:[%s1175 + $0x10] sm:$0xff]
        %v1505 = vld [vmem:[%s1175 + $0x18] sm:$0xff]
        %v1506 = vsub.f32 %v1498, %v1502
        %v1507 = vsub.f32 %v1499, %v1503
        %v1508 = vsub.f32 %v1500, %v1504
        %v1509 = vsub.f32 %v1501, %v1505
        %v1510 = vand.u32 2147483647, %v1506
        %v1511 = vand.u32 2147483647, %v1507
        %v1512 = vand.u32 2147483647, %v1508
        %v1513 = vand.u32 2147483647, %v1509
        %v1514 = vmul.f32 %v1510, %v1446
        %v1515 = vmul.f32 %v1511, %v1447
        %v1516 = vmul.f32 %v1512, %v1448
        %v1517 = vmul.f32 %v1513, %v1449
        %v1518 = vld [vmem:[%s1148] sm:$0xff]
        %v1519 = vld [vmem:[%s1148 + $0x8] sm:$0xff]
        %v1520 = vld [vmem:[%s1148 + $0x10] sm:$0xff]
        %v1521 = vld [vmem:[%s1148 + $0x18] sm:$0xff]
        %v1522 = vld [vmem:[%s1184] sm:$0xff]
        %v1523 = vld [vmem:[%s1184 + $0x8] sm:$0xff]
        %v1524 = vld [vmem:[%s1184 + $0x10] sm:$0xff]
        %v1525 = vld [vmem:[%s1184 + $0x18] sm:$0xff]
        %v1526 = vsub.f32 %v1518, %v1522
        %v1527 = vsub.f32 %v1519, %v1523
        %v1528 = vsub.f32 %v1520, %v1524
        %v1529 = vsub.f32 %v1521, %v1525
        %v1530 = vand.u32 2147483647, %v1526
        %v1531 = vand.u32 2147483647, %v1527
        %v1532 = vand.u32 2147483647, %v1528
        %v1533 = vand.u32 2147483647, %v1529
        %v1534 = vmul.f32 %v1530, %v1450
        %v1535 = vmul.f32 %v1531, %v1451
        %v1536 = vmul.f32 %v1532, %v1452
        %v1537 = vmul.f32 %v1533, %v1453
        %v1538 = vadd.f32 %v1514, %v1534
        %v1539 = vadd.f32 %v1515, %v1535
        %v1540 = vadd.f32 %v1516, %v1536
        %v1541 = vadd.f32 %v1517, %v1537
        %v1542 = vld [vmem:[%s1297] sm:$0xff]
        %v1543 = vadd.f32 %v1442, %v1444
        %v1544 = vadd.f32 %v1443, %v1445
        %v1545 = vadd.f32 %v1543, %v1544
        %v1546 = vadd.f32 %v1542, %v1545
        %1547 = vst [vmem:[%s1297] sm:$0xff] %v1546
        %v1548 = vld [vmem:[%s1297 + $0x8] sm:$0xff]
        %v1549 = vadd.f32 %v1434, %v1436
        %v1550 = vadd.f32 %v1435, %v1437
        %v1551 = vadd.f32 %v1549, %v1550
        %v1552 = vadd.f32 %v1548, %v1551
        %1553 = vst [vmem:[%s1297 + $0x8] sm:$0xff] %v1552
        %v1554 = vld [vmem:[%s1297 + $0x10] sm:$0xff]
        %v1555 = vadd.f32 %v1494, %v1496
        %v1556 = vadd.f32 %v1495, %v1497
        %v1557 = vadd.f32 %v1555, %v1556
        %v1558 = vadd.f32 %v1554, %v1557
        %1559 = vst [vmem:[%s1297 + $0x10] sm:$0xff] %v1558
        %v1560 = vld [vmem:[%s1297 + $0x18] sm:$0xff]
        %v1561 = vadd.f32 %v1538, %v1540
        %v1562 = vadd.f32 %v1539, %v1541
        %v1563 = vadd.f32 %v1561, %v1562
        %v1564 = vadd.f32 %v1560, %v1563
        %1565 = vst [vmem:[%s1297 + $0x18] sm:$0xff] %v1564
        %s1566 = sand.u32 %s465, 1
        %s1567 = scalar_lea.sflag [#allocation4], %s1566
        %s1568 = sand.u32 %s465, 1
        %s1569 = smul.addr %s1568, 32
        %s1570 = scalar_lea.vmem [#allocation22], %s1569
        // Predicated region
        $region121: #{tpu_custom_call.1} parent=67 // pred_check
          %p1571 = pneg %p475
        $region122: #{tpu_custom_call.1} parent=67 // pred_check_branch
          %1573 = sbr.rel (%p1571) target = $region124
        $region123: #{tpu_custom_call.1} parent=67 // pred_region
          %s1574 = smul.u32 4, %s51
          %s1576 = ssub.s32 512, 512
          %1577 = vsyncadd %s1567, %s1576
          %s1578 = smul.addr %s1574, 128
          %s1579 = scalar_lea.hbm %s12, %s1578
          %s1580 = sshll.u32 %s1570, 4
          %s1581 = int_to_ptr.vmem [resolvable:$true] %s1580
          %1586 = dma.vmem_to_hbm [thread:$0]  %s1581, 512, %s1579, %s1567, 128, 128, 8
        $region124: #{tpu_custom_call.1} parent=67 // pred_fallthru
          _
      $region68: #{tpu_custom_call.1} parent=5 // pred_fallthru
        _
      %p1587 = scmp.le.s32.totalorder 2, %s42
      // Predicated region
      $region125: #{tpu_custom_call.1} parent=5 // pred_check
        %p1588 = pneg %p1587
      $region126: #{tpu_custom_call.1} parent=5 // pred_check_branch
        %1590 = sbr.rel (%p1588) target = $region128
      $region127: #{tpu_custom_call.1} parent=5 // pred_region
        %s1591 = ssub.s32 %s42, 2
        // Predicated region
        $region129: #{tpu_custom_call.1} parent=127 // pred_check
          %p1592 = pneg %p481
        $region130: #{tpu_custom_call.1} parent=127 // pred_check_branch
          %1594 = sbr.rel (%p1592) target = $region132
        $region131: #{tpu_custom_call.1} parent=127 // pred_region
          %s1595 = sand.u32 %s466, 1
          %s1596 = scalar_lea.sflag [#allocation4], %s1595
          %s1597 = sand.u32 %s466, 1
          %s1598 = smul.addr %s1597, 32
          %s1599 = scalar_lea.vmem [#allocation22], %s1598
          %1600 = dma.done %s1596, 512
        $region132: #{tpu_custom_call.1} parent=127 // pred_fallthru
          _
      $region128: #{tpu_custom_call.1} parent=5 // pred_fallthru
        _
    $region6: #{tpu_custom_call.1} parent=1 // loop_footer
      %s46 = sadd.s32 1, %s42
    $region7: #{tpu_custom_call.1} parent=1 // loop_footer_branch
      %41 = sbr.rel target = $region3
    $region8: #{tpu_custom_call.1} parent=1 // loop_exit
      _
    %1601 = vsyncpa [#allocation3], 1
    %s1602 = scalar_lea.sflag [#allocation3], 1
    %1603 = vsyncpa %s1602, 1
    %1604 = vsyncpa [#allocation6], 1
    %s1605 = scalar_lea.sflag [#allocation6], 1
    %1606 = vsyncpa %s1605, 1
    %1607 = vsyncpa [#allocation9], 1
    %s1608 = scalar_lea.sflag [#allocation9], 1
    %1609 = vsyncpa %s1608, 1
    %1610 = vsyncpa [#allocation12], 1
    %s1611 = scalar_lea.sflag [#allocation12], 1
    %1612 = vsyncpa %s1611, 1
    %1613 = vsyncpa [#allocation15], 1
    %s1614 = scalar_lea.sflag [#allocation15], 1
    %1615 = vsyncpa %s1614, 1
    %1616 = vsyncpa [#allocation18], 1
    %s1617 = scalar_lea.sflag [#allocation18], 1
    %1618 = vsyncpa %s1617, 1
    %1619 = vsyncpa [#allocation21], 1
    %s1620 = scalar_lea.sflag [#allocation21], 1
    %1621 = vsyncpa %s1620, 1
    %1622 = vsyncpa [#allocation4], 1
    %s1623 = scalar_lea.sflag [#allocation4], 1
    %1624 = vsyncpa %s1623, 1

</llo_original>
